<compile_context>
chip_gen: v6e
topology: v6e:2x2x1
jax: 0.10.0
libtpu: 0.0.40
codegen_flags: <defaults>
</compile_context>

<pallas_src>
import functools

import jax
import jax.numpy as jnp
import numpy as np
from jax import lax
from jax.experimental import pallas as pl
from jax.experimental.pallas import tpu as pltpu


def _cond_lstm_gen_kernel(x_ref, wih_ref, whh_ref, bias_ref, wlin_ref,
                          blin_ref, out_ref, *, hidden_size, seq_len):
    """One batch element per grid program: full LSTM recurrence + output head.

    x_ref:    (1, T, D)   latent input for this batch element
    wih_ref:  (D, 4H)     input->gates weight (label column folded out,
                          i/f/o blocks pre-scaled by 0.5 for tanh-sigmoid)
    whh_ref:  (H, 4H)     hidden->gates weight (same pre-scaling)
    bias_ref: (1, 1, 4H)  b_ih + b_hh + label*W_ih[:,0], pre-scaled
    wlin_ref: (1, H)      output linear weight (torch layout)
    blin_ref: (1,)        output linear bias (SMEM scalar)
    out_ref:  (1, 1, T)   tanh(linear(h_t)), lane-dense
    """
    H, T = hidden_size, seq_len

    # ---- 1) Input projection hoisted out of the recurrence -----------------
    # One (T, D) @ (D, 4H) matmul for all timesteps; effective bias (with the
    # folded label term and the sigmoid-via-tanh pre-scale) added once.
    x = x_ref[0]                                                 # (T, D)
    xg = jnp.dot(x, wih_ref[...],
                 preferred_element_type=jnp.float32) + bias_ref[0]  # (T, 4H)

    # Recurrent weight loaded from VMEM once, outside the loop.
    whh = whh_ref[...]                                           # (H, 4H)

    # ---- 2) Recurrence, fully unrolled (T small & static) ------------------
    # h / c / all h_t stay in registers; per step: one MXU push (h @ W_hh),
    # one tanh over the 4H gate tile, one tanh(c).
    h = jnp.zeros((1, H), jnp.float32)
    c = jnp.zeros((1, H), jnp.float32)
    hs = []
    for t in range(T):
        gates = xg[t:t + 1, :] + jnp.dot(h, whh,
                                         preferred_element_type=jnp.float32)
        tg = jnp.tanh(gates)                    # single EUP pass over (1, 4H)
        i_g = 0.5 + 0.5 * tg[:, 0 * H:1 * H]    # sigmoid(x) = .5*(1+tanh(x/2))
        f_g = 0.5 + 0.5 * tg[:, 1 * H:2 * H]
        g_g = tg[:, 2 * H:3 * H]                # g-gate lanes were NOT scaled
        o_g = 0.5 + 0.5 * tg[:, 3 * H:4 * H]
        c = f_g * c + i_g * g_g
        h = o_g * jnp.tanh(c)
        hs.append(h)

    # ---- 3) Output head, hoisted out of the loop, lane-dense ---------------
    h_all = jnp.concatenate(hs, axis=0)                          # (T, H)
    z = jnp.dot(wlin_ref[...], h_all.T,
                preferred_element_type=jnp.float32)              # (1, T)
    out_ref[0] = jnp.tanh(z + blin_ref[0])


def cond_lstm_generator_forward(latent_var, labels, params):
    """latent_var: (B, T, latent_dim) f32, labels: (B, 1) f32 -> (B, T) f32."""
    w_ih, w_hh, b_ih, b_hh, w_lin, b_lin = params
    B, T, D = latent_var.shape
    H = w_hh.shape[1]                      # torch weight_hh_l0 is (4H, H)

    latent_var = latent_var.astype(jnp.float32)
    labels = labels.astype(jnp.float32)
    w_ih = jnp.asarray(w_ih, jnp.float32)                 # (4H, D+1)
    w_hh = jnp.asarray(w_hh, jnp.float32)                 # (4H, H)

    # sigmoid(x) = 0.5*(1 + tanh(x/2)): pre-scale the i/f/o gate blocks of the
    # weights and bias by 0.5 so the kernel needs only one tanh per step.
    gate_scale = jnp.full((4 * H,), 0.5, jnp.float32).at[2 * H:3 * H].set(1.0)

    # Fold the broadcast label column (column 0 of W_ih) and both LSTM biases
    # into a per-batch effective gate bias -> no concat / broadcast / (B,T,F)
    # intermediate in HBM.
    bias_eff = ((jnp.asarray(b_ih, jnp.float32)
                 + jnp.asarray(b_hh, jnp.float32))[None, :]
                + labels @ w_ih[:, 0:1].T)                # (B, 4H)
    bias_eff = (bias_eff * gate_scale[None, :]).reshape(B, 1, 4 * H)

    wih_t = w_ih[:, 1:].T * gate_scale[None, :]           # (D, 4H)
    whh_t = w_hh.T * gate_scale[None, :]                  # (H, 4H)
    wlin = jnp.asarray(w_lin, jnp.float32).reshape(1, H)  # (1, H)
    blin = jnp.asarray(b_lin, jnp.float32).reshape(1)     # (1,) SMEM scalar

    kernel = functools.partial(_cond_lstm_gen_kernel, hidden_size=H, seq_len=T)

    out = pl.pallas_call(
        kernel,
        out_shape=jax.ShapeDtypeStruct((B, 1, T), jnp.float32),
        grid=(B,),
        in_specs=[
            pl.BlockSpec((1, T, D), lambda b: (b, 0, 0)),        # x
            pl.BlockSpec((D, 4 * H), lambda b: (0, 0)),          # W_ih'
            pl.BlockSpec((H, 4 * H), lambda b: (0, 0)),          # W_hh'
            pl.BlockSpec((1, 1, 4 * H), lambda b: (b, 0, 0)),    # bias_eff
            pl.BlockSpec((1, H), lambda b: (0, 0)),              # W_lin
            pl.BlockSpec(memory_space=pltpu.MemorySpace.SMEM),   # b_lin scalar
        ],
        out_specs=pl.BlockSpec((1, 1, T), lambda b: (b, 0, 0)),
        compiler_params=pltpu.CompilerParams(
            dimension_semantics=("parallel",)),
    )(latent_var, wih_t, whh_t, bias_eff, wlin, blin)

    return out.reshape(B, T)                               # torch (B, T) layout


def _reference_forward(latent_var, labels, params):
    """Pure-JAX reference (lax.scan) mirroring torch.nn.LSTM semantics."""
    w_ih, w_hh, b_ih, b_hh, w_lin, b_lin = params
    B, T, D = latent_var.shape
    H = w_hh.shape[1]
    lab = jnp.broadcast_to(labels[:, None, :], (B, T, 1))
    x = jnp.concatenate([lab, latent_var], axis=-1)          # (B, T, F)

    def step(carry, x_t):
        h, c = carry
        gates = x_t @ w_ih.T + h @ w_hh.T + b_ih + b_hh
        i_g = jax.nn.sigmoid(gates[:, 0 * H:1 * H])
        f_g = jax.nn.sigmoid(gates[:, 1 * H:2 * H])
        g_g = jnp.tanh(gates[:, 2 * H:3 * H])
        o_g = jax.nn.sigmoid(gates[:, 3 * H:4 * H])
        c = f_g * c + i_g * g_g
        h = o_g * jnp.tanh(c)
        return (h, c), h

    h0 = jnp.zeros((B, H), jnp.float32)
    _, h_seq = lax.scan(step, (h0, h0), jnp.transpose(x, (1, 0, 2)))  # (T,B,H)
    h_seq = jnp.transpose(h_seq, (1, 0, 2))                           # (B,T,H)
    y = jnp.tanh(jnp.einsum('bth,oh->bto', h_seq, w_lin) + b_lin)
    return y[..., 0]                                                  # (B,T)


def _init_params(key, latent_dim, hidden_size):
    """Deterministic synthetic weights in PyTorch nn.LSTM / nn.Linear layout."""
    F = latent_dim + 1
    H = hidden_size
    k = 1.0 / np.sqrt(H)
    ks = jax.random.split(key, 6)
    w_ih = jax.random.uniform(ks[0], (4 * H, F), jnp.float32, -k, k)
    w_hh = jax.random.uniform(ks[1], (4 * H, H), jnp.float32, -k, k)
    b_ih = jax.random.uniform(ks[2], (4 * H,), jnp.float32, -k, k)
    b_hh = jax.random.uniform(ks[3], (4 * H,), jnp.float32, -k, k)
    w_lin = jax.random.uniform(ks[4], (1, H), jnp.float32, -k, k)
    b_lin = jax.random.uniform(ks[5], (1,), jnp.float32, -k, k)
    return (w_ih, w_hh, b_ih, b_hh, w_lin, b_lin)


if __name__ == "__main__":
    batch = 2
    seq_len = 8
    latent_dim = 10
    hidden_size = 32

    key = jax.random.PRNGKey(0)
    k_lat, k_lab, k_par = jax.random.split(key, 3)

    latent_var = jax.random.normal(k_lat, (batch, seq_len, latent_dim),
                                   jnp.float32)
    labels = jax.random.normal(k_lab, (batch, 1), jnp.float32)
    params = _init_params(k_par, latent_dim, hidden_size)

    y = cond_lstm_generator_forward(latent_var, labels, params)
    y = jax.block_until_ready(y)

    y_ref = jax.block_until_ready(_reference_forward(latent_var, labels, params))
    np.testing.assert_allclose(np.asarray(y), np.asarray(y_ref),
                               rtol=1e-4, atol=1e-4)
    assert y.shape == (batch, seq_len)

    print("KERNEL_OK")
</pallas_src>

<mosaic_0001>
module attributes {stable_mosaic.version = 11 : i64} {
  func.func @_cond_lstm_gen_kernel(%arg0: i32, %arg1: memref<1x8x10xf32, #tpu.memory_space<vmem>>, %arg2: memref<10x128xf32, #tpu.memory_space<vmem>>, %arg3: memref<32x128xf32, #tpu.memory_space<vmem>>, %arg4: memref<1x1x128xf32, #tpu.memory_space<vmem>>, %arg5: memref<1x32xf32, #tpu.memory_space<vmem>>, %arg6: memref<1xf32, #tpu.memory_space<smem>>, %arg7: memref<1x1x8xf32, #tpu.memory_space<vmem>>) attributes {dimension_semantics = [#tpu.dimension_semantics<parallel>], iteration_bounds = array<i64: 2>, scalar_prefetch = 0 : i64, scratch_operands = 0 : i64, tpu.core_type = #tpu.core_type<tc>, window_params = [{transform_indices = @transform_0, window_bounds = array<i64: 1, 8, 10>}, {pipeline_mode = #tpu.pipeline_mode<synchronous>, transform_indices = @transform_1, window_bounds = array<i64: 10, 128>}, {pipeline_mode = #tpu.pipeline_mode<synchronous>, transform_indices = @transform_2, window_bounds = array<i64: 32, 128>}, {transform_indices = @transform_3, window_bounds = array<i64: 1, 1, 128>}, {pipeline_mode = #tpu.pipeline_mode<synchronous>, transform_indices = @transform_4, window_bounds = array<i64: 1, 32>}, {transform_indices = @transform_5, window_bounds = array<i64: 1>}, {transform_indices = @transform_6, window_bounds = array<i64: 1, 1, 8>}]} {
    %c0 = arith.constant 0 : index
    %c0_0 = arith.constant 0 : index
    %c0_1 = arith.constant 0 : index
    %0 = vector.load %arg1[%c0, %c0_0, %c0_1] : memref<1x8x10xf32, #tpu.memory_space<vmem>>, vector<1x8x10xf32>
    %1 = vector.shape_cast %0 : vector<1x8x10xf32> to vector<8x10xf32>
    %c0_2 = arith.constant 0 : index
    %c0_3 = arith.constant 0 : index
    %2 = vector.load %arg2[%c0_2, %c0_3] : memref<10x128xf32, #tpu.memory_space<vmem>>, vector<10x128xf32>
    %cst = arith.constant dense<0.000000e+00> : vector<8x128xf32>
    %3 = tpu.matmul %1, %2, %cst {dimension_numbers = #tpu.dot_dimension_numbers<[1], [0], [0], [1], [0, 0, 1, 1], [], []>} : vector<8x10xf32>, vector<10x128xf32>, vector<8x128xf32> -> vector<8x128xf32>
    %c0_4 = arith.constant 0 : index
    %c0_5 = arith.constant 0 : index
    %c0_6 = arith.constant 0 : index
    %4 = vector.load %arg4[%c0_4, %c0_5, %c0_6] : memref<1x1x128xf32, #tpu.memory_space<vmem>>, vector<1x1x128xf32>
    %5 = vector.shape_cast %4 : vector<1x1x128xf32> to vector<1x128xf32>
    %6 = vector.broadcast %5 : vector<1x128xf32> to vector<8x128xf32>
    %7 = arith.addf %3, %6 : vector<8x128xf32>
    %c0_7 = arith.constant 0 : index
    %c0_8 = arith.constant 0 : index
    %8 = vector.load %arg3[%c0_7, %c0_8] : memref<32x128xf32, #tpu.memory_space<vmem>>, vector<32x128xf32>
    %cst_9 = arith.constant 0.000000e+00 : f32
    %9 = vector.broadcast %cst_9 : f32 to vector<1x32xf32>
    %cst_10 = arith.constant 0.000000e+00 : f32
    %10 = vector.broadcast %cst_10 : f32 to vector<1x32xf32>
    %11 = vector.extract_strided_slice %7 {offsets = [0, 0], sizes = [1, 128], strides = [1, 1]} : vector<8x128xf32> to vector<1x128xf32>
    %cst_11 = arith.constant dense<0.000000e+00> : vector<1x128xf32>
    %12 = tpu.matmul %9, %8, %cst_11 {dimension_numbers = #tpu.dot_dimension_numbers<[1], [0], [0], [1], [0, 0, 1, 1], [], []>} : vector<1x32xf32>, vector<32x128xf32>, vector<1x128xf32> -> vector<1x128xf32>
    %13 = arith.addf %11, %12 : vector<1x128xf32>
    %14 = math.tanh %13 : vector<1x128xf32>
    %15 = vector.extract_strided_slice %14 {offsets = [0, 0], sizes = [1, 32], strides = [1, 1]} : vector<1x128xf32> to vector<1x32xf32>
    %cst_12 = arith.constant 5.000000e-01 : f32
    %16 = vector.broadcast %cst_12 : f32 to vector<1x32xf32>
    %17 = arith.mulf %16, %15 : vector<1x32xf32>
    %cst_13 = arith.constant 5.000000e-01 : f32
    %18 = vector.broadcast %cst_13 : f32 to vector<1x32xf32>
    %19 = arith.addf %18, %17 : vector<1x32xf32>
    %20 = vector.extract_strided_slice %14 {offsets = [0, 32], sizes = [1, 32], strides = [1, 1]} : vector<1x128xf32> to vector<1x32xf32>
    %cst_14 = arith.constant 5.000000e-01 : f32
    %21 = vector.broadcast %cst_14 : f32 to vector<1x32xf32>
    %22 = arith.mulf %21, %20 : vector<1x32xf32>
    %cst_15 = arith.constant 5.000000e-01 : f32
    %23 = vector.broadcast %cst_15 : f32 to vector<1x32xf32>
    %24 = arith.addf %23, %22 : vector<1x32xf32>
    %25 = vector.extract_strided_slice %14 {offsets = [0, 64], sizes = [1, 32], strides = [1, 1]} : vector<1x128xf32> to vector<1x32xf32>
    %26 = vector.extract_strided_slice %14 {offsets = [0, 96], sizes = [1, 32], strides = [1, 1]} : vector<1x128xf32> to vector<1x32xf32>
    %cst_16 = arith.constant 5.000000e-01 : f32
    %27 = vector.broadcast %cst_16 : f32 to vector<1x32xf32>
    %28 = arith.mulf %27, %26 : vector<1x32xf32>
    %cst_17 = arith.constant 5.000000e-01 : f32
    %29 = vector.broadcast %cst_17 : f32 to vector<1x32xf32>
    %30 = arith.addf %29, %28 : vector<1x32xf32>
    %31 = arith.mulf %24, %10 : vector<1x32xf32>
    %32 = arith.mulf %19, %25 : vector<1x32xf32>
    %33 = arith.addf %31, %32 : vector<1x32xf32>
    %34 = math.tanh %33 : vector<1x32xf32>
    %35 = arith.mulf %30, %34 : vector<1x32xf32>
    %36 = vector.extract_strided_slice %7 {offsets = [1, 0], sizes = [1, 128], strides = [1, 1]} : vector<8x128xf32> to vector<1x128xf32>
    %cst_18 = arith.constant dense<0.000000e+00> : vector<1x128xf32>
    %37 = tpu.matmul %35, %8, %cst_18 {dimension_numbers = #tpu.dot_dimension_numbers<[1], [0], [0], [1], [0, 0, 1, 1], [], []>} : vector<1x32xf32>, vector<32x128xf32>, vector<1x128xf32> -> vector<1x128xf32>
    %38 = arith.addf %36, %37 : vector<1x128xf32>
    %39 = math.tanh %38 : vector<1x128xf32>
    %40 = vector.extract_strided_slice %39 {offsets = [0, 0], sizes = [1, 32], strides = [1, 1]} : vector<1x128xf32> to vector<1x32xf32>
    %cst_19 = arith.constant 5.000000e-01 : f32
    %41 = vector.broadcast %cst_19 : f32 to vector<1x32xf32>
    %42 = arith.mulf %41, %40 : vector<1x32xf32>
    %cst_20 = arith.constant 5.000000e-01 : f32
    %43 = vector.broadcast %cst_20 : f32 to vector<1x32xf32>
    %44 = arith.addf %43, %42 : vector<1x32xf32>
    %45 = vector.extract_strided_slice %39 {offsets = [0, 32], sizes = [1, 32], strides = [1, 1]} : vector<1x128xf32> to vector<1x32xf32>
    %cst_21 = arith.constant 5.000000e-01 : f32
    %46 = vector.broadcast %cst_21 : f32 to vector<1x32xf32>
    %47 = arith.mulf %46, %45 : vector<1x32xf32>
    %cst_22 = arith.constant 5.000000e-01 : f32
    %48 = vector.broadcast %cst_22 : f32 to vector<1x32xf32>
    %49 = arith.addf %48, %47 : vector<1x32xf32>
    %50 = vector.extract_strided_slice %39 {offsets = [0, 64], sizes = [1, 32], strides = [1, 1]} : vector<1x128xf32> to vector<1x32xf32>
    %51 = vector.extract_strided_slice %39 {offsets = [0, 96], sizes = [1, 32], strides = [1, 1]} : vector<1x128xf32> to vector<1x32xf32>
    %cst_23 = arith.constant 5.000000e-01 : f32
    %52 = vector.broadcast %cst_23 : f32 to vector<1x32xf32>
    %53 = arith.mulf %52, %51 : vector<1x32xf32>
    %cst_24 = arith.constant 5.000000e-01 : f32
    %54 = vector.broadcast %cst_24 : f32 to vector<1x32xf32>
    %55 = arith.addf %54, %53 : vector<1x32xf32>
    %56 = arith.mulf %49, %33 : vector<1x32xf32>
    %57 = arith.mulf %44, %50 : vector<1x32xf32>
    %58 = arith.addf %56, %57 : vector<1x32xf32>
    %59 = math.tanh %58 : vector<1x32xf32>
    %60 = arith.mulf %55, %59 : vector<1x32xf32>
    %61 = vector.extract_strided_slice %7 {offsets = [2, 0], sizes = [1, 128], strides = [1, 1]} : vector<8x128xf32> to vector<1x128xf32>
    %cst_25 = arith.constant dense<0.000000e+00> : vector<1x128xf32>
    %62 = tpu.matmul %60, %8, %cst_25 {dimension_numbers = #tpu.dot_dimension_numbers<[1], [0], [0], [1], [0, 0, 1, 1], [], []>} : vector<1x32xf32>, vector<32x128xf32>, vector<1x128xf32> -> vector<1x128xf32>
    %63 = arith.addf %61, %62 : vector<1x128xf32>
    %64 = math.tanh %63 : vector<1x128xf32>
    %65 = vector.extract_strided_slice %64 {offsets = [0, 0], sizes = [1, 32], strides = [1, 1]} : vector<1x128xf32> to vector<1x32xf32>
    %cst_26 = arith.constant 5.000000e-01 : f32
    %66 = vector.broadcast %cst_26 : f32 to vector<1x32xf32>
    %67 = arith.mulf %66, %65 : vector<1x32xf32>
    %cst_27 = arith.constant 5.000000e-01 : f32
    %68 = vector.broadcast %cst_27 : f32 to vector<1x32xf32>
    %69 = arith.addf %68, %67 : vector<1x32xf32>
    %70 = vector.extract_strided_slice %64 {offsets = [0, 32], sizes = [1, 32], strides = [1, 1]} : vector<1x128xf32> to vector<1x32xf32>
    %cst_28 = arith.constant 5.000000e-01 : f32
    %71 = vector.broadcast %cst_28 : f32 to vector<1x32xf32>
    %72 = arith.mulf %71, %70 : vector<1x32xf32>
    %cst_29 = arith.constant 5.000000e-01 : f32
    %73 = vector.broadcast %cst_29 : f32 to vector<1x32xf32>
    %74 = arith.addf %73, %72 : vector<1x32xf32>
    %75 = vector.extract_strided_slice %64 {offsets = [0, 64], sizes = [1, 32], strides = [1, 1]} : vector<1x128xf32> to vector<1x32xf32>
    %76 = vector.extract_strided_slice %64 {offsets = [0, 96], sizes = [1, 32], strides = [1, 1]} : vector<1x128xf32> to vector<1x32xf32>
    %cst_30 = arith.constant 5.000000e-01 : f32
    %77 = vector.broadcast %cst_30 : f32 to vector<1x32xf32>
    %78 = arith.mulf %77, %76 : vector<1x32xf32>
    %cst_31 = arith.constant 5.000000e-01 : f32
    %79 = vector.broadcast %cst_31 : f32 to vector<1x32xf32>
    %80 = arith.addf %79, %78 : vector<1x32xf32>
    %81 = arith.mulf %74, %58 : vector<1x32xf32>
    %82 = arith.mulf %69, %75 : vector<1x32xf32>
    %83 = arith.addf %81, %82 : vector<1x32xf32>
    %84 = math.tanh %83 : vector<1x32xf32>
    %85 = arith.mulf %80, %84 : vector<1x32xf32>
    %86 = vector.extract_strided_slice %7 {offsets = [3, 0], sizes = [1, 128], strides = [1, 1]} : vector<8x128xf32> to vector<1x128xf32>
    %cst_32 = arith.constant dense<0.000000e+00> : vector<1x128xf32>
    %87 = tpu.matmul %85, %8, %cst_32 {dimension_numbers = #tpu.dot_dimension_numbers<[1], [0], [0], [1], [0, 0, 1, 1], [], []>} : vector<1x32xf32>, vector<32x128xf32>, vector<1x128xf32> -> vector<1x128xf32>
    %88 = arith.addf %86, %87 : vector<1x128xf32>
    %89 = math.tanh %88 : vector<1x128xf32>
    %90 = vector.extract_strided_slice %89 {offsets = [0, 0], sizes = [1, 32], strides = [1, 1]} : vector<1x128xf32> to vector<1x32xf32>
    %cst_33 = arith.constant 5.000000e-01 : f32
    %91 = vector.broadcast %cst_33 : f32 to vector<1x32xf32>
    %92 = arith.mulf %91, %90 : vector<1x32xf32>
    %cst_34 = arith.constant 5.000000e-01 : f32
    %93 = vector.broadcast %cst_34 : f32 to vector<1x32xf32>
    %94 = arith.addf %93, %92 : vector<1x32xf32>
    %95 = vector.extract_strided_slice %89 {offsets = [0, 32], sizes = [1, 32], strides = [1, 1]} : vector<1x128xf32> to vector<1x32xf32>
    %cst_35 = arith.constant 5.000000e-01 : f32
    %96 = vector.broadcast %cst_35 : f32 to vector<1x32xf32>
    %97 = arith.mulf %96, %95 : vector<1x32xf32>
    %cst_36 = arith.constant 5.000000e-01 : f32
    %98 = vector.broadcast %cst_36 : f32 to vector<1x32xf32>
    %99 = arith.addf %98, %97 : vector<1x32xf32>
    %100 = vector.extract_strided_slice %89 {offsets = [0, 64], sizes = [1, 32], strides = [1, 1]} : vector<1x128xf32> to vector<1x32xf32>
    %101 = vector.extract_strided_slice %89 {offsets = [0, 96], sizes = [1, 32], strides = [1, 1]} : vector<1x128xf32> to vector<1x32xf32>
    %cst_37 = arith.constant 5.000000e-01 : f32
    %102 = vector.broadcast %cst_37 : f32 to vector<1x32xf32>
    %103 = arith.mulf %102, %101 : vector<1x32xf32>
    %cst_38 = arith.constant 5.000000e-01 : f32
    %104 = vector.broadcast %cst_38 : f32 to vector<1x32xf32>
    %105 = arith.addf %104, %103 : vector<1x32xf32>
    %106 = arith.mulf %99, %83 : vector<1x32xf32>
    %107 = arith.mulf %94, %100 : vector<1x32xf32>
    %108 = arith.addf %106, %107 : vector<1x32xf32>
    %109 = math.tanh %108 : vector<1x32xf32>
    %110 = arith.mulf %105, %109 : vector<1x32xf32>
    %111 = vector.extract_strided_slice %7 {offsets = [4, 0], sizes = [1, 128], strides = [1, 1]} : vector<8x128xf32> to vector<1x128xf32>
    %cst_39 = arith.constant dense<0.000000e+00> : vector<1x128xf32>
    %112 = tpu.matmul %110, %8, %cst_39 {dimension_numbers = #tpu.dot_dimension_numbers<[1], [0], [0], [1], [0, 0, 1, 1], [], []>} : vector<1x32xf32>, vector<32x128xf32>, vector<1x128xf32> -> vector<1x128xf32>
    %113 = arith.addf %111, %112 : vector<1x128xf32>
    %114 = math.tanh %113 : vector<1x128xf32>
    %115 = vector.extract_strided_slice %114 {offsets = [0, 0], sizes = [1, 32], strides = [1, 1]} : vector<1x128xf32> to vector<1x32xf32>
    %cst_40 = arith.constant 5.000000e-01 : f32
    %116 = vector.broadcast %cst_40 : f32 to vector<1x32xf32>
    %117 = arith.mulf %116, %115 : vector<1x32xf32>
    %cst_41 = arith.constant 5.000000e-01 : f32
    %118 = vector.broadcast %cst_41 : f32 to vector<1x32xf32>
    %119 = arith.addf %118, %117 : vector<1x32xf32>
    %120 = vector.extract_strided_slice %114 {offsets = [0, 32], sizes = [1, 32], strides = [1, 1]} : vector<1x128xf32> to vector<1x32xf32>
    %cst_42 = arith.constant 5.000000e-01 : f32
    %121 = vector.broadcast %cst_42 : f32 to vector<1x32xf32>
    %122 = arith.mulf %121, %120 : vector<1x32xf32>
    %cst_43 = arith.constant 5.000000e-01 : f32
    %123 = vector.broadcast %cst_43 : f32 to vector<1x32xf32>
    %124 = arith.addf %123, %122 : vector<1x32xf32>
    %125 = vector.extract_strided_slice %114 {offsets = [0, 64], sizes = [1, 32], strides = [1, 1]} : vector<1x128xf32> to vector<1x32xf32>
    %126 = vector.extract_strided_slice %114 {offsets = [0, 96], sizes = [1, 32], strides = [1, 1]} : vector<1x128xf32> to vector<1x32xf32>
    %cst_44 = arith.constant 5.000000e-01 : f32
    %127 = vector.broadcast %cst_44 : f32 to vector<1x32xf32>
    %128 = arith.mulf %127, %126 : vector<1x32xf32>
    %cst_45 = arith.constant 5.000000e-01 : f32
    %129 = vector.broadcast %cst_45 : f32 to vector<1x32xf32>
    %130 = arith.addf %129, %128 : vector<1x32xf32>
    %131 = arith.mulf %124, %108 : vector<1x32xf32>
    %132 = arith.mulf %119, %125 : vector<1x32xf32>
    %133 = arith.addf %131, %132 : vector<1x32xf32>
    %134 = math.tanh %133 : vector<1x32xf32>
    %135 = arith.mulf %130, %134 : vector<1x32xf32>
    %136 = vector.extract_strided_slice %7 {offsets = [5, 0], sizes = [1, 128], strides = [1, 1]} : vector<8x128xf32> to vector<1x128xf32>
    %cst_46 = arith.constant dense<0.000000e+00> : vector<1x128xf32>
    %137 = tpu.matmul %135, %8, %cst_46 {dimension_numbers = #tpu.dot_dimension_numbers<[1], [0], [0], [1], [0, 0, 1, 1], [], []>} : vector<1x32xf32>, vector<32x128xf32>, vector<1x128xf32> -> vector<1x128xf32>
    %138 = arith.addf %136, %137 : vector<1x128xf32>
    %139 = math.tanh %138 : vector<1x128xf32>
    %140 = vector.extract_strided_slice %139 {offsets = [0, 0], sizes = [1, 32], strides = [1, 1]} : vector<1x128xf32> to vector<1x32xf32>
    %cst_47 = arith.constant 5.000000e-01 : f32
    %141 = vector.broadcast %cst_47 : f32 to vector<1x32xf32>
    %142 = arith.mulf %141, %140 : vector<1x32xf32>
    %cst_48 = arith.constant 5.000000e-01 : f32
    %143 = vector.broadcast %cst_48 : f32 to vector<1x32xf32>
    %144 = arith.addf %143, %142 : vector<1x32xf32>
    %145 = vector.extract_strided_slice %139 {offsets = [0, 32], sizes = [1, 32], strides = [1, 1]} : vector<1x128xf32> to vector<1x32xf32>
    %cst_49 = arith.constant 5.000000e-01 : f32
    %146 = vector.broadcast %cst_49 : f32 to vector<1x32xf32>
    %147 = arith.mulf %146, %145 : vector<1x32xf32>
    %cst_50 = arith.constant 5.000000e-01 : f32
    %148 = vector.broadcast %cst_50 : f32 to vector<1x32xf32>
    %149 = arith.addf %148, %147 : vector<1x32xf32>
    %150 = vector.extract_strided_slice %139 {offsets = [0, 64], sizes = [1, 32], strides = [1, 1]} : vector<1x128xf32> to vector<1x32xf32>
    %151 = vector.extract_strided_slice %139 {offsets = [0, 96], sizes = [1, 32], strides = [1, 1]} : vector<1x128xf32> to vector<1x32xf32>
    %cst_51 = arith.constant 5.000000e-01 : f32
    %152 = vector.broadcast %cst_51 : f32 to vector<1x32xf32>
    %153 = arith.mulf %152, %151 : vector<1x32xf32>
    %cst_52 = arith.constant 5.000000e-01 : f32
    %154 = vector.broadcast %cst_52 : f32 to vector<1x32xf32>
    %155 = arith.addf %154, %153 : vector<1x32xf32>
    %156 = arith.mulf %149, %133 : vector<1x32xf32>
    %157 = arith.mulf %144, %150 : vector<1x32xf32>
    %158 = arith.addf %156, %157 : vector<1x32xf32>
    %159 = math.tanh %158 : vector<1x32xf32>
    %160 = arith.mulf %155, %159 : vector<1x32xf32>
    %161 = vector.extract_strided_slice %7 {offsets = [6, 0], sizes = [1, 128], strides = [1, 1]} : vector<8x128xf32> to vector<1x128xf32>
    %cst_53 = arith.constant dense<0.000000e+00> : vector<1x128xf32>
    %162 = tpu.matmul %160, %8, %cst_53 {dimension_numbers = #tpu.dot_dimension_numbers<[1], [0], [0], [1], [0, 0, 1, 1], [], []>} : vector<1x32xf32>, vector<32x128xf32>, vector<1x128xf32> -> vector<1x128xf32>
    %163 = arith.addf %161, %162 : vector<1x128xf32>
    %164 = math.tanh %163 : vector<1x128xf32>
    %165 = vector.extract_strided_slice %164 {offsets = [0, 0], sizes = [1, 32], strides = [1, 1]} : vector<1x128xf32> to vector<1x32xf32>
    %cst_54 = arith.constant 5.000000e-01 : f32
    %166 = vector.broadcast %cst_54 : f32 to vector<1x32xf32>
    %167 = arith.mulf %166, %165 : vector<1x32xf32>
    %cst_55 = arith.constant 5.000000e-01 : f32
    %168 = vector.broadcast %cst_55 : f32 to vector<1x32xf32>
    %169 = arith.addf %168, %167 : vector<1x32xf32>
    %170 = vector.extract_strided_slice %164 {offsets = [0, 32], sizes = [1, 32], strides = [1, 1]} : vector<1x128xf32> to vector<1x32xf32>
    %cst_56 = arith.constant 5.000000e-01 : f32
    %171 = vector.broadcast %cst_56 : f32 to vector<1x32xf32>
    %172 = arith.mulf %171, %170 : vector<1x32xf32>
    %cst_57 = arith.constant 5.000000e-01 : f32
    %173 = vector.broadcast %cst_57 : f32 to vector<1x32xf32>
    %174 = arith.addf %173, %172 : vector<1x32xf32>
    %175 = vector.extract_strided_slice %164 {offsets = [0, 64], sizes = [1, 32], strides = [1, 1]} : vector<1x128xf32> to vector<1x32xf32>
    %176 = vector.extract_strided_slice %164 {offsets = [0, 96], sizes = [1, 32], strides = [1, 1]} : vector<1x128xf32> to vector<1x32xf32>
    %cst_58 = arith.constant 5.000000e-01 : f32
    %177 = vector.broadcast %cst_58 : f32 to vector<1x32xf32>
    %178 = arith.mulf %177, %176 : vector<1x32xf32>
    %cst_59 = arith.constant 5.000000e-01 : f32
    %179 = vector.broadcast %cst_59 : f32 to vector<1x32xf32>
    %180 = arith.addf %179, %178 : vector<1x32xf32>
    %181 = arith.mulf %174, %158 : vector<1x32xf32>
    %182 = arith.mulf %169, %175 : vector<1x32xf32>
    %183 = arith.addf %181, %182 : vector<1x32xf32>
    %184 = math.tanh %183 : vector<1x32xf32>
    %185 = arith.mulf %180, %184 : vector<1x32xf32>
    %186 = vector.extract_strided_slice %7 {offsets = [7, 0], sizes = [1, 128], strides = [1, 1]} : vector<8x128xf32> to vector<1x128xf32>
    %cst_60 = arith.constant dense<0.000000e+00> : vector<1x128xf32>
    %187 = tpu.matmul %185, %8, %cst_60 {dimension_numbers = #tpu.dot_dimension_numbers<[1], [0], [0], [1], [0, 0, 1, 1], [], []>} : vector<1x32xf32>, vector<32x128xf32>, vector<1x128xf32> -> vector<1x128xf32>
    %188 = arith.addf %186, %187 : vector<1x128xf32>
    %189 = math.tanh %188 : vector<1x128xf32>
    %190 = vector.extract_strided_slice %189 {offsets = [0, 0], sizes = [1, 32], strides = [1, 1]} : vector<1x128xf32> to vector<1x32xf32>
    %cst_61 = arith.constant 5.000000e-01 : f32
    %191 = vector.broadcast %cst_61 : f32 to vector<1x32xf32>
    %192 = arith.mulf %191, %190 : vector<1x32xf32>
    %cst_62 = arith.constant 5.000000e-01 : f32
    %193 = vector.broadcast %cst_62 : f32 to vector<1x32xf32>
    %194 = arith.addf %193, %192 : vector<1x32xf32>
    %195 = vector.extract_strided_slice %189 {offsets = [0, 32], sizes = [1, 32], strides = [1, 1]} : vector<1x128xf32> to vector<1x32xf32>
    %cst_63 = arith.constant 5.000000e-01 : f32
    %196 = vector.broadcast %cst_63 : f32 to vector<1x32xf32>
    %197 = arith.mulf %196, %195 : vector<1x32xf32>
    %cst_64 = arith.constant 5.000000e-01 : f32
    %198 = vector.broadcast %cst_64 : f32 to vector<1x32xf32>
    %199 = arith.addf %198, %197 : vector<1x32xf32>
    %200 = vector.extract_strided_slice %189 {offsets = [0, 64], sizes = [1, 32], strides = [1, 1]} : vector<1x128xf32> to vector<1x32xf32>
    %201 = vector.extract_strided_slice %189 {offsets = [0, 96], sizes = [1, 32], strides = [1, 1]} : vector<1x128xf32> to vector<1x32xf32>
    %cst_65 = arith.constant 5.000000e-01 : f32
    %202 = vector.broadcast %cst_65 : f32 to vector<1x32xf32>
    %203 = arith.mulf %202, %201 : vector<1x32xf32>
    %cst_66 = arith.constant 5.000000e-01 : f32
    %204 = vector.broadcast %cst_66 : f32 to vector<1x32xf32>
    %205 = arith.addf %204, %203 : vector<1x32xf32>
    %206 = arith.mulf %199, %183 : vector<1x32xf32>
    %207 = arith.mulf %194, %200 : vector<1x32xf32>
    %208 = arith.addf %206, %207 : vector<1x32xf32>
    %209 = math.tanh %208 : vector<1x32xf32>
    %210 = arith.mulf %205, %209 : vector<1x32xf32>
    %211 = tpu.concatenate %35, %60, %85, %110, %135, %160, %185, %210 in 0 : vector<1x32xf32>, vector<1x32xf32>, vector<1x32xf32>, vector<1x32xf32>, vector<1x32xf32>, vector<1x32xf32>, vector<1x32xf32>, vector<1x32xf32> -> vector<8x32xf32>
    %c0_67 = arith.constant 0 : index
    %c0_68 = arith.constant 0 : index
    %212 = vector.load %arg5[%c0_67, %c0_68] : memref<1x32xf32, #tpu.memory_space<vmem>>, vector<1x32xf32>
    %213 = tpu.transpose %211, [1, 0] : vector<8x32xf32> -> vector<32x8xf32>
    %cst_69 = arith.constant dense<0.000000e+00> : vector<1x8xf32>
    %214 = tpu.matmul %212, %213, %cst_69 {dimension_numbers = #tpu.dot_dimension_numbers<[1], [0], [0], [1], [0, 0, 1, 1], [], []>} : vector<1x32xf32>, vector<32x8xf32>, vector<1x8xf32> -> vector<1x8xf32>
    %c0_70 = arith.constant 0 : index
    %215 = memref.load %arg6[%c0_70] : memref<1xf32, #tpu.memory_space<smem>>
    %216 = vector.broadcast %215 : f32 to vector<1x8xf32>
    %217 = arith.addf %214, %216 : vector<1x8xf32>
    %218 = math.tanh %217 : vector<1x8xf32>
    %c0_71 = arith.constant 0 : index
    %c0_72 = arith.constant 0 : index
    %c0_73 = arith.constant 0 : index
    %219 = vector.load %arg7[%c0_71, %c0_72, %c0_73] : memref<1x1x8xf32, #tpu.memory_space<vmem>>, vector<1x1x8xf32>
    %220 = vector.shape_cast %219 : vector<1x1x8xf32> to vector<1x8xf32>
    %221 = vector.shape_cast %218 : vector<1x8xf32> to vector<1x1x8xf32>
    tpu.vector_store %arg7[%c0_71, %c0_72, %c0_73], %221 {strides = array<i32>} : memref<1x1x8xf32, #tpu.memory_space<vmem>>, vector<1x1x8xf32>,
    return
  }
  func.func @transform_0(%arg0: i32) -> (i32, i32, i32) {
    %c0_i32 = arith.constant 0 : i32
    %c0_i32_0 = arith.constant 0 : i32
    %c0_i32_1 = arith.constant 0 : i32
    return %arg0, %c0_i32, %c0_i32_0 : i32, i32, i32
  }
  func.func @transform_1(%arg0: i32) -> (i32, i32) {
    %c0_i32 = arith.constant 0 : i32
    %c0_i32_0 = arith.constant 0 : i32
    %c0_i32_1 = arith.constant 0 : i32
    return %c0_i32, %c0_i32_0 : i32, i32
  }
  func.func @transform_2(%arg0: i32) -> (i32, i32) {
    %c0_i32 = arith.constant 0 : i32
    %c0_i32_0 = arith.constant 0 : i32
    %c0_i32_1 = arith.constant 0 : i32
    return %c0_i32, %c0_i32_0 : i32, i32
  }
  func.func @transform_3(%arg0: i32) -> (i32, i32, i32) {
    %c0_i32 = arith.constant 0 : i32
    %c0_i32_0 = arith.constant 0 : i32
    %c0_i32_1 = arith.constant 0 : i32
    return %arg0, %c0_i32, %c0_i32_0 : i32, i32, i32
  }
  func.func @transform_4(%arg0: i32) -> (i32, i32) {
    %c0_i32 = arith.constant 0 : i32
    %c0_i32_0 = arith.constant 0 : i32
    %c0_i32_1 = arith.constant 0 : i32
    return %c0_i32, %c0_i32_0 : i32, i32
  }
  func.func @transform_5(%arg0: i32) -> i32 {
    %c0_i32 = arith.constant 0 : i32
    %c0_i32_0 = arith.constant 0 : i32
    return %c0_i32 : i32
  }
  func.func @transform_6(%arg0: i32) -> (i32, i32, i32) {
    %c0_i32 = arith.constant 0 : i32
    %c0_i32_0 = arith.constant 0 : i32
    %c0_i32_1 = arith.constant 0 : i32
    return %arg0, %c0_i32, %c0_i32_0 : i32, i32, i32
  }
}

</mosaic_0001>

<llo_original>
// kernel: tpu_custom_call.1
$region0: #{tpu_custom_call.1}
  #allocation0 [shape = 'u32[]', space=smem, size = 0x4, offset = 0x4, fixed_abs, tag = 'smem constant byte address 0x4 - core index']
  #allocation1 [shape = 'u32[144,128]{1,0:T(1,128)}', space=vmem, size = 0x12000, scoped, tag = 'internal scratch']
  #allocation2 [shape = 'f32[1]{0:T(128)S(6)}', space=smem, size = 0x200, scoped, tag = 'scoped memory for tpu_custom_call.1']
  %s0 = inlined_call_operand.hbm [shape: f32[2,8,10], index: 0, kind: input, shape index: {}]
  %s1 = inlined_call_operand.hbm [shape: f32[10,128], index: 1, kind: input, shape index: {}]
  %s2 = inlined_call_operand.hbm [shape: f32[32,128], index: 2, kind: input, shape index: {}]
  %s3 = inlined_call_operand.vmem [shape: f32[2,1,128], index: 3, kind: input, shape index: {}]
  %s4 = inlined_call_operand.vmem [shape: f32[1,32], index: 4, kind: input, shape index: {}]
  %s5 = inlined_call_operand.<no memory space> [shape: f32[1], index: 5, kind: input, shape index: {}]
  %s6 = inlined_call_operand.hbm [shape: f32[2,1,8], index: 6, kind: output, shape index: {}]
  %s7 = sld [smem:[#allocation0]]
  $region69: #{tpu_custom_call.1} parent=0
    _
  %s9 = ssub.s32 1, %s7
  %s10 = scalar_select 0, %s9, %s7
  %11 = sst [smem:[#allocation2]] %s5
  $region1: #{tpu_custom_call.1} parent=0
    #allocation3 [shape = 'u8[8192]{0}', space=vmem, size = 0x2000, scoped, tag = 'input window, operand 0']
    #allocation4 [shape = 's32[2]{0}', space=sflag, size = 0x8, scoped, tag = 'scoped memory for tpu_custom_call.1']
    #allocation5 [shape = 's32[2]{0}', space=sflag, size = 0x8, scoped, tag = 'scoped memory for tpu_custom_call.1']
    #allocation6 [shape = 'u8[8192]{0}', space=vmem, size = 0x2000, scoped, tag = 'input window, operand 1, single buffered']
    #allocation7 [shape = 's32[1]{0}', space=sflag, size = 0x4, scoped, tag = 'scoped memory for tpu_custom_call.1']
    #allocation8 [shape = 'u8[16384]{0}', space=vmem, size = 0x4000, scoped, tag = 'input window, operand 2, single buffered']
    #allocation9 [shape = 'u8[1024]{0}', space=vmem, size = 0x400, scoped, tag = 'output window, operand 0']
    %12 = vsyncpa [#allocation4], 0
    %s13 = scalar_lea.sflag [#allocation4], 1
    %14 = vsyncpa %s13, 0
    %15 = vsyncpa [#allocation7], 0
    %16 = vsyncpa [#allocation5], 0
    %s17 = scalar_lea.sflag [#allocation5], 1
    %18 = vsyncpa %s17, 0
    loop: start=0, step=1, limit=4
    $region2: #{tpu_custom_call.1} parent=1 // loop_pre_header
      _
    $region3: #{tpu_custom_call.1} parent=1 // loop_header
      %s20 = sphi 0, %s24
      %p21 = scmp.ge.s32.totalorder %s20, 4
      %s30 = sphi 0, %s32
      %s33 = sphi 0, %s30
      %s34 = sphi 0, %s33
      %s50 = sphi 0, %s34
      %s54 = sphi 0, %s54
      %s56 = sphi 0, %s54
      %s57 = sphi 0, %s56
      %s71 = sphi 0, %s57
      %s75 = sphi 0, %s75
      %s77 = sphi 0, %s75
      %s78 = sphi 0, %s77
      %s92 = sphi 0, %s78
      %s98 = sphi 0, %s100
      %s101 = sphi 0, %s98
      %s102 = sphi 0, %s101
      %s118 = sphi 0, %s102
      %s122 = sphi 0, %s122
      %s124 = sphi 0, %s122
      %s125 = sphi 0, %s124
      %s139 = sphi 0, %s125
      %s143 = sphi 0, %s143
      %s145 = sphi 0, %s143
      %s146 = sphi 0, %s145
      %s160 = sphi 0, %s146
      %s166 = sphi 0, %s168
      %s169 = sphi 0, %s166
      %s170 = sphi 0, %s169
      %s186 = sphi 0, %s170
    $region4: #{tpu_custom_call.1} parent=1 // loop_header_branch
      %23 = sbr.rel (%p21) target = $region8
    $region5: #{tpu_custom_call.1} parent=1 // loop_body
      %s25 = ssub.s32 %s20, 1
      %s26 = ssub.s32 %s20, 2
      %s27 = sadd.s32 %s20, 1
      %s28 = ssub.s32 %s20, %s27
      %p29 = scmp.eq.s32.totalorder %s28, 0
      %s31 = sadd.s32 %s30, 1
      %s32 = scalar_select %p29, %s30, %s31
      %p35 = pneg %p29
      %p36 = scmp.eq.s32.totalorder %s20, 1
      %p37 = por %p35, %p36
      %p38 = scmp.ne.s32.totalorder %s30, %s33
      %p39 = scmp.eq.s32.totalorder %s20, 0
      %p40 = por %p38, %p39
      %p41 = scmp.ne.s32.totalorder %s30, %s33
      %p42 = scmp.eq.s32.totalorder %s25, 1
      %p43 = por %p41, %p42
      %p44 = scmp.ne.s32.totalorder %s33, %s34
      %p45 = scmp.eq.s32.totalorder %s25, 0
      %p46 = por %p44, %p45
      %p47 = scmp.ne.s32.totalorder %s33, %s34
      %p48 = scmp.eq.s32.totalorder %s26, 1
      %p49 = por %p47, %p48
      %p51 = scmp.ne.s32.totalorder %s34, %s50
      %p52 = scmp.eq.s32.totalorder %s26, 0
      %p53 = por %p51, %p52
      %s55 = sadd.s32 %s54, 1
      %p58 = scmp.eq.s32.totalorder %s20, 1
      %p59 = scmp.ne.s32.totalorder %s54, %s56
      %p60 = scmp.eq.s32.totalorder %s20, 0
      %p61 = por %p59, %p60
      %p62 = scmp.ne.s32.totalorder %s54, %s56
      %p63 = scmp.eq.s32.totalorder %s25, 1
      %p64 = por %p62, %p63
      %p65 = scmp.ne.s32.totalorder %s56, %s57
      %p66 = scmp.eq.s32.totalorder %s25, 0
      %p67 = por %p65, %p66
      %p68 = scmp.ne.s32.totalorder %s56, %s57
      %p69 = scmp.eq.s32.totalorder %s26, 1
      %p70 = por %p68, %p69
      %p72 = scmp.ne.s32.totalorder %s57, %s71
      %p73 = scmp.eq.s32.totalorder %s26, 0
      %p74 = por %p72, %p73
      %s76 = sadd.s32 %s75, 1
      %p79 = scmp.eq.s32.totalorder %s20, 1
      %p80 = scmp.ne.s32.totalorder %s75, %s77
      %p81 = scmp.eq.s32.totalorder %s20, 0
      %p82 = por %p80, %p81
      %p83 = scmp.ne.s32.totalorder %s75, %s77
      %p84 = scmp.eq.s32.totalorder %s25, 1
      %p85 = por %p83, %p84
      %p86 = scmp.ne.s32.totalorder %s77, %s78
      %p87 = scmp.eq.s32.totalorder %s25, 0
      %p88 = por %p86, %p87
      %p89 = scmp.ne.s32.totalorder %s77, %s78
      %p90 = scmp.eq.s32.totalorder %s26, 1
      %p91 = por %p89, %p90
      %p93 = scmp.ne.s32.totalorder %s78, %s92
      %p94 = scmp.eq.s32.totalorder %s26, 0
      %p95 = por %p93, %p94
      %s96 = ssub.s32 %s20, %s27
      %p97 = scmp.eq.s32.totalorder %s96, 0
      %s99 = sadd.s32 %s98, 1
      %s100 = scalar_select %p97, %s98, %s99
      %p103 = pneg %p97
      %p104 = scmp.eq.s32.totalorder %s20, 1
      %p105 = por %p103, %p104
      %p106 = scmp.ne.s32.totalorder %s98, %s101
      %p107 = scmp.eq.s32.totalorder %s20, 0
      %p108 = por %p106, %p107
      %p109 = scmp.ne.s32.totalorder %s98, %s101
      %p110 = scmp.eq.s32.totalorder %s25, 1
      %p111 = por %p109, %p110
      %p112 = scmp.ne.s32.totalorder %s101, %s102
      %p113 = scmp.eq.s32.totalorder %s25, 0
      %p114 = por %p112, %p113
      %p115 = scmp.ne.s32.totalorder %s101, %s102
      %p116 = scmp.eq.s32.totalorder %s26, 1
      %p117 = por %p115, %p116
      %p119 = scmp.ne.s32.totalorder %s102, %s118
      %p120 = scmp.eq.s32.totalorder %s26, 0
      %p121 = por %p119, %p120
      %s123 = sadd.s32 %s122, 1
      %p126 = scmp.eq.s32.totalorder %s20, 1
      %p127 = scmp.ne.s32.totalorder %s122, %s124
      %p128 = scmp.eq.s32.totalorder %s20, 0
      %p129 = por %p127, %p128
      %p130 = scmp.ne.s32.totalorder %s122, %s124
      %p131 = scmp.eq.s32.totalorder %s25, 1
      %p132 = por %p130, %p131
      %p133 = scmp.ne.s32.totalorder %s124, %s125
      %p134 = scmp.eq.s32.totalorder %s25, 0
      %p135 = por %p133, %p134
      %p136 = scmp.ne.s32.totalorder %s124, %s125
      %p137 = scmp.eq.s32.totalorder %s26, 1
      %p138 = por %p136, %p137
      %p140 = scmp.ne.s32.totalorder %s125, %s139
      %p141 = scmp.eq.s32.totalorder %s26, 0
      %p142 = por %p140, %p141
      %s144 = sadd.s32 %s143, 1
      %p147 = scmp.eq.s32.totalorder %s20, 1
      %p148 = scmp.ne.s32.totalorder %s143, %s145
      %p149 = scmp.eq.s32.totalorder %s20, 0
      %p150 = por %p148, %p149
      %p151 = scmp.ne.s32.totalorder %s143, %s145
      %p152 = scmp.eq.s32.totalorder %s25, 1
      %p153 = por %p151, %p152
      %p154 = scmp.ne.s32.totalorder %s145, %s146
      %p155 = scmp.eq.s32.totalorder %s25, 0
      %p156 = por %p154, %p155
      %p157 = scmp.ne.s32.totalorder %s145, %s146
      %p158 = scmp.eq.s32.totalorder %s26, 1
      %p159 = por %p157, %p158
      %p161 = scmp.ne.s32.totalorder %s146, %s160
      %p162 = scmp.eq.s32.totalorder %s26, 0
      %p163 = por %p161, %p162
      %s164 = ssub.s32 %s20, %s27
      %p165 = scmp.eq.s32.totalorder %s164, 0
      %s167 = sadd.s32 %s166, 1
      %s168 = scalar_select %p165, %s166, %s167
      %p171 = pneg %p165
      %p172 = scmp.eq.s32.totalorder %s20, 1
      %p173 = por %p171, %p172
      %p174 = scmp.ne.s32.totalorder %s166, %s169
      %p175 = scmp.eq.s32.totalorder %s20, 0
      %p176 = por %p174, %p175
      %p177 = scmp.ne.s32.totalorder %s166, %s169
      %p178 = scmp.eq.s32.totalorder %s25, 1
      %p179 = por %p177, %p178
      %p180 = scmp.ne.s32.totalorder %s169, %s170
      %p181 = scmp.eq.s32.totalorder %s25, 0
      %p182 = por %p180, %p181
      %p183 = scmp.ne.s32.totalorder %s169, %s170
      %p184 = scmp.eq.s32.totalorder %s26, 1
      %p185 = por %p183, %p184
      %p187 = scmp.ne.s32.totalorder %s170, %s186
      %p188 = scmp.eq.s32.totalorder %s26, 0
      %p189 = por %p187, %p188
      %p190 = scmp.le.s32.totalorder 1, %s20
      %p191 = scmp.lt.s32.totalorder %s20, 3
      %p192 = pnand %p190, %p191
      %p193 = pneg %p192
      // Predicated region
      $region9: #{tpu_custom_call.1} parent=5 // pred_check
        _
      $region10: #{tpu_custom_call.1} parent=5 // pred_check_branch
        %195 = sbr.rel (%p192) target = $region12
      $region11: #{tpu_custom_call.1} parent=5 // pred_region
        %s196 = ssub.s32 %s20, 1
        // Predicated region
        $region13: #{tpu_custom_call.1} parent=11 // pred_check
          %p197 = pneg %p67
        $region14: #{tpu_custom_call.1} parent=11 // pred_check_branch
          %199 = sbr.rel (%p197) target = $region16
        $region15: #{tpu_custom_call.1} parent=11 // pred_region
          %s201 = ssub.s32 256, 256
          %202 = vsyncadd [#allocation7], %s201
          %s203 = sshll.u32 [#allocation6], 4
          %s204 = int_to_ptr.vmem [resolvable:$true] %s203
          %209 = dma.hbm_to_vmem [thread:$0]  %s1, 256, %s204, [#allocation7], 128, 128, 8
        $region16: #{tpu_custom_call.1} parent=11 // pred_fallthru
          _
        // Predicated region
        $region17: #{tpu_custom_call.1} parent=11 // pred_check
          %p210 = pneg %p88
        $region18: #{tpu_custom_call.1} parent=11 // pred_check_branch
          %212 = sbr.rel (%p210) target = $region20
        $region19: #{tpu_custom_call.1} parent=11 // pred_region
          %s214 = ssub.s32 512, 512
          %215 = vsyncadd [#allocation7], %s214
          %s216 = sshll.u32 [#allocation8], 4
          %s217 = int_to_ptr.vmem [resolvable:$true] %s216
          %222 = dma.hbm_to_vmem [thread:$0]  %s2, 512, %s217, [#allocation7], 128, 128, 8
        $region20: #{tpu_custom_call.1} parent=11 // pred_fallthru
          _
        // Predicated region
        $region21: #{tpu_custom_call.1} parent=11 // pred_check
          %p223 = pneg %p135
        $region22: #{tpu_custom_call.1} parent=11 // pred_check_branch
          %225 = sbr.rel (%p223) target = $region24
        $region23: #{tpu_custom_call.1} parent=11 // pred_region
          _
        $region24: #{tpu_custom_call.1} parent=11 // pred_fallthru
          _
        // Predicated region
        $region25: #{tpu_custom_call.1} parent=11 // pred_check
          %p226 = pneg %p156
        $region26: #{tpu_custom_call.1} parent=11 // pred_check_branch
          %228 = sbr.rel (%p226) target = $region28
        $region27: #{tpu_custom_call.1} parent=11 // pred_region
          _
        $region28: #{tpu_custom_call.1} parent=11 // pred_fallthru
          _
      $region12: #{tpu_custom_call.1} parent=5 // pred_fallthru
        _
      %p229 = scmp.lt.s32.totalorder %s20, 2
      // Predicated region
      $region29: #{tpu_custom_call.1} parent=5 // pred_check
        %p230 = pneg %p229
      $region30: #{tpu_custom_call.1} parent=5 // pred_check_branch
        %232 = sbr.rel (%p230) target = $region32
      $region31: #{tpu_custom_call.1} parent=5 // pred_region
        // Predicated region
        $region33: #{tpu_custom_call.1} parent=31 // pred_check
          %p233 = pneg %p40
        $region34: #{tpu_custom_call.1} parent=31 // pred_check_branch
          %235 = sbr.rel (%p233) target = $region36
        $region35: #{tpu_custom_call.1} parent=31 // pred_region
          %s236 = sand.u32 %s30, 1
          %s237 = scalar_lea.sflag [#allocation4], %s236
          %s238 = sand.u32 %s30, 1
          %s239 = smul.addr %s238, 8
          %s240 = scalar_lea.vmem [#allocation3], %s239
          %s242 = ssub.s32 128, 128
          %243 = vsyncadd %s237, %s242
          %s244 = smul.addr %s20, 128
          %s245 = scalar_lea.hbm %s0, %s244
          %s247 = sshll.u32 %s240, 4
          %s248 = int_to_ptr.vmem [resolvable:$true] %s247
          %250 = dma.hbm_to_vmem [thread:$0]  %s245, 128, %s248, %s237
        $region36: #{tpu_custom_call.1} parent=31 // pred_fallthru
          _
        // Predicated region
        $region37: #{tpu_custom_call.1} parent=31 // pred_check
          %p251 = pneg %p108
        $region38: #{tpu_custom_call.1} parent=31 // pred_check_branch
          %253 = sbr.rel (%p251) target = $region40
        $region39: #{tpu_custom_call.1} parent=31 // pred_region
          %p254 = scmp.lt.s32.totalorder %s20, 1
          %s255 = scalar_select %p254, %s20, 1
          %s256 = scalar_lea.vmem %s3, %s255
        $region40: #{tpu_custom_call.1} parent=31 // pred_fallthru
          _
      $region32: #{tpu_custom_call.1} parent=5 // pred_fallthru
        _
      %p257 = scmp.le.s32.totalorder 1, %s20
      %p258 = scmp.lt.s32.totalorder %s20, 3
      %p259 = pnand %p257, %p258
      %p260 = pneg %p259
      // Predicated region
      $region41: #{tpu_custom_call.1} parent=5 // pred_check
        _
      $region42: #{tpu_custom_call.1} parent=5 // pred_check_branch
        %262 = sbr.rel (%p259) target = $region44
      $region43: #{tpu_custom_call.1} parent=5 // pred_region
        %s263 = ssub.s32 %s20, 1
        %s264 = sand.u32 %s33, 1
        %s265 = scalar_lea.sflag [#allocation4], %s264
        %s266 = sand.u32 %s33, 1
        %s267 = smul.addr %s266, 8
        %s268 = scalar_lea.vmem [#allocation3], %s267
        // Predicated region
        $region45: #{tpu_custom_call.1} parent=43 // pred_check
          %p269 = pneg %p46
        $region46: #{tpu_custom_call.1} parent=43 // pred_check_branch
          %271 = sbr.rel (%p269) target = $region48
        $region47: #{tpu_custom_call.1} parent=43 // pred_region
          %272 = dma.done %s265, 128
        $region48: #{tpu_custom_call.1} parent=43 // pred_fallthru
          _
        // Predicated region
        $region49: #{tpu_custom_call.1} parent=43 // pred_check
          %p273 = pneg %p67
        $region50: #{tpu_custom_call.1} parent=43 // pred_check_branch
          %275 = sbr.rel (%p273) target = $region52
        $region51: #{tpu_custom_call.1} parent=43 // pred_region
          %276 = dma.done [#allocation7], 256
        $region52: #{tpu_custom_call.1} parent=43 // pred_fallthru
          _
        // Predicated region
        $region53: #{tpu_custom_call.1} parent=43 // pred_check
          %p277 = pneg %p88
        $region54: #{tpu_custom_call.1} parent=43 // pred_check_branch
          %279 = sbr.rel (%p277) target = $region56
        $region55: #{tpu_custom_call.1} parent=43 // pred_region
          %280 = dma.done [#allocation7], 512
        $region56: #{tpu_custom_call.1} parent=43 // pred_fallthru
          _
        %s281 = sand.u32 %s33, 1
        %s282 = scalar_lea.sflag [#allocation4], %s281
        %s283 = sand.u32 %s33, 1
        %s284 = smul.addr %s283, 8
        %s285 = scalar_lea.vmem [#allocation3], %s284
        %p286 = pneg %p46
        %p287 = pneg %p43
        %p288 = pneg %p67
        %p289 = pneg %p64
        %p290 = pneg %p88
        %p291 = pneg %p85
        %p292 = scmp.lt.s32.totalorder %s25, 1
        %s293 = scalar_select %p292, %s25, 1
        %s294 = scalar_lea.vmem %s3, %s293
        %p295 = pneg %p114
        %p296 = pneg %p111
        %p297 = pneg %p135
        %p298 = pneg %p132
        %p299 = pneg %p156
        %p300 = pneg %p153
        %p301 = pneg %p182
        %p302 = pneg %p179
        %s303 = sand.u32 %s169, 1
        %s304 = scalar_lea.sflag [#allocation5], %s303
        %s305 = sand.u32 %s169, 1
        %s306 = scalar_lea.vmem [#allocation9], %s305
        %p307 = scmp.lt.s32.totalorder %s25, 1
        %s308 = scalar_select %p307, %s25, 1
        %s309 = scalar_lea.vmem %s3, %s308
        %v310 = vld [vmem:[%s268] sm:$0xff]
        %v311 = vld [vmem:[#allocation6] sm:$0xff]
        %v312 = vld [vmem:[#allocation6 + $0x8] sm:$0x3]
        %v313 = vld [vmem:[%s309] sm:$0x1]
        %v315 = vlaneseq
        %v316 = vshrl.u32 %v315, 7
        %v317 = vsub.s32 0, %v316
        %v318 = vrot.slane %v313, %v317
        %vm320 = vcmask 80896
        %v322 = vsel %vm320, %v310, 0
        %vm324 = vcmask 1041408
        %v326 = vsel %vm324, %v312, 0
        %328 = vmatprep.subr.mxu0 0.0
        %329 = vmatpush1.msra.mxu0 0.0
        %330 = vmatprep.subr.mxu0 0.0
        %331 = vmatpush1.msra.mxu0 0.0
        %332 = vmatprep.subr.mxu0 0.0
        %333 = vmatpush1.msra.mxu0 0.0
        %334 = vmatprep.subr.mxu0 0.0
        %335 = vmatpush1.msra.mxu0 0.0
        %336 = vmatprep.subr.mxu0 0.0
        %337 = vmatpush1.msra.mxu0 0.0
        %338 = vmatprep.subr.mxu0 0.0
        %339 = vmatpush1.msra.mxu0 0.0
        %340 = vmatprep.subr.mxu0 0.0
        %341 = vmatpush1.msra.mxu0 0.0
        %342 = vmatprep.subr.mxu0 0.0
        %343 = vmatpush1.msra.mxu0 0.0
        %344 = vmatprep.subr.mxu0 0.0
        %345 = vmatpush1.msra.mxu0 0.0
        %346 = vmatprep.subr.mxu0 0.0
        %347 = vmatpush1.msra.mxu0 0.0
        %348 = vmatprep.subr.mxu0 0.0
        %349 = vmatpush1.msra.mxu0 0.0
        %350 = vmatprep.subr.mxu0 0.0
        %351 = vmatpush1.msra.mxu0 0.0
        %352 = vmatprep.subr.mxu0 0.0
        %353 = vmatpush1.msra.mxu0 0.0
        %354 = vmatprep.subr.mxu0 0.0
        %355 = vmatpush1.msra.mxu0 0.0
        %356 = vmatprep.subr.mxu0 0.0
        %357 = vmatpush1.msra.mxu0 %v326
        %358 = vmatprep.subr.mxu0 0.0
        %359 = vmatpush1.msra.mxu0 %v311
        %360 = vmatprep.subr.mxu0 0.0
        %361 = vmatpush2.msra.mxu0 0.0
        %362 = vmatprep.subr.mxu0 0.0
        %363 = vmatpush2.msra.mxu0 0.0
        %364 = vmatprep.subr.mxu0 0.0
        %365 = vmatpush2.msra.mxu0 0.0
        %366 = vmatprep.subr.mxu0 0.0
        %367 = vmatpush2.msra.mxu0 0.0
        %368 = vmatprep.subr.mxu0 0.0
        %369 = vmatpush2.msra.mxu0 0.0
        %370 = vmatprep.subr.mxu0 0.0
        %371 = vmatpush2.msra.mxu0 0.0
        %372 = vmatprep.subr.mxu0 0.0
        %373 = vmatpush2.msra.mxu0 0.0
        %374 = vmatprep.subr.mxu0 0.0
        %375 = vmatpush2.msra.mxu0 0.0
        %376 = vmatprep.subr.mxu0 0.0
        %377 = vmatpush2.msra.mxu0 0.0
        %378 = vmatprep.subr.mxu0 0.0
        %379 = vmatpush2.msra.mxu0 0.0
        %380 = vmatprep.subr.mxu0 0.0
        %381 = vmatpush2.msra.mxu0 0.0
        %382 = vmatprep.subr.mxu0 0.0
        %383 = vmatpush2.msra.mxu0 0.0
        %384 = vmatprep.subr.mxu0 0.0
        %385 = vmatpush2.msra.mxu0 0.0
        %386 = vmatprep.subr.mxu0 0.0
        %387 = vmatpush2.msra.mxu0 0.0
        %388 = vmatprep.subr.mxu0 0.0
        %389 = vmatpush2.msra.mxu0 0.0
        %390 = vmatprep.subr.mxu0 0.0
        %391 = vmatpush2.msra.mxu0 0.0
        %392 = vmatprep.mubr.f32.mxu0 0.0
        %393 = vmatmul.mubr.f32.gmra.mxu0 %v322
        %v394 = vpop.f32.mrf.mxu0
        %v395 = vadd.f32 %v318, %v394
        %v396 = vpop.f32.mrf.mxu0
        %397 = vdwg.mxu0
        %v398 = vld [vmem:[#allocation8] sm:$0xff]
        %v399 = vld [vmem:[#allocation8 + $0x8] sm:$0xff]
        %v400 = vld [vmem:[#allocation8 + $0x10] sm:$0xff]
        %v401 = vld [vmem:[#allocation8 + $0x18] sm:$0xff]
        %vm402 = vcmask 261120
        %v404 = vsel %vm402, 0.0, 0
        %406 = vmatprep.subr.mxu0 0.0
        %407 = vmatpush1.msra.mxu0 0.0
        %408 = vmatprep.subr.mxu0 0.0
        %409 = vmatpush1.msra.mxu0 0.0
        %410 = vmatprep.subr.mxu0 0.0
        %411 = vmatpush1.msra.mxu0 0.0
        %412 = vmatprep.subr.mxu0 0.0
        %413 = vmatpush1.msra.mxu0 0.0
        %414 = vmatprep.subr.mxu0 0.0
        %415 = vmatpush1.msra.mxu0 0.0
        %416 = vmatprep.subr.mxu0 0.0
        %417 = vmatpush1.msra.mxu0 0.0
        %418 = vmatprep.subr.mxu0 0.0
        %419 = vmatpush1.msra.mxu0 0.0
        %420 = vmatprep.subr.mxu0 0.0
        %421 = vmatpush1.msra.mxu0 0.0
        %422 = vmatprep.subr.mxu0 0.0
        %423 = vmatpush1.msra.mxu0 0.0
        %424 = vmatprep.subr.mxu0 0.0
        %425 = vmatpush1.msra.mxu0 0.0
        %426 = vmatprep.subr.mxu0 0.0
        %427 = vmatpush1.msra.mxu0 0.0
        %428 = vmatprep.subr.mxu0 0.0
        %429 = vmatpush1.msra.mxu0 0.0
        %430 = vmatprep.subr.mxu0 0.0
        %431 = vmatpush1.msra.mxu0 %v401
        %432 = vmatprep.subr.mxu0 0.0
        %433 = vmatpush1.msra.mxu0 %v400
        %434 = vmatprep.subr.mxu0 0.0
        %435 = vmatpush1.msra.mxu0 %v399
        %436 = vmatprep.subr.mxu0 0.0
        %437 = vmatpush1.msra.mxu0 %v398
        %438 = vmatprep.subr.mxu0 0.0
        %439 = vmatpush2.msra.mxu0 0.0
        %440 = vmatprep.subr.mxu0 0.0
        %441 = vmatpush2.msra.mxu0 0.0
        %442 = vmatprep.subr.mxu0 0.0
        %443 = vmatpush2.msra.mxu0 0.0
        %444 = vmatprep.subr.mxu0 0.0
        %445 = vmatpush2.msra.mxu0 0.0
        %446 = vmatprep.subr.mxu0 0.0
        %447 = vmatpush2.msra.mxu0 0.0
        %448 = vmatprep.subr.mxu0 0.0
        %449 = vmatpush2.msra.mxu0 0.0
        %450 = vmatprep.subr.mxu0 0.0
        %451 = vmatpush2.msra.mxu0 0.0
        %452 = vmatprep.subr.mxu0 0.0
        %453 = vmatpush2.msra.mxu0 0.0
        %454 = vmatprep.subr.mxu0 0.0
        %455 = vmatpush2.msra.mxu0 0.0
        %456 = vmatprep.subr.mxu0 0.0
        %457 = vmatpush2.msra.mxu0 0.0
        %458 = vmatprep.subr.mxu0 0.0
        %459 = vmatpush2.msra.mxu0 0.0
        %460 = vmatprep.subr.mxu0 0.0
        %461 = vmatpush2.msra.mxu0 0.0
        %462 = vmatprep.subr.mxu0 0.0
        %463 = vmatpush2.msra.mxu0 0.0
        %464 = vmatprep.subr.mxu0 0.0
        %465 = vmatpush2.msra.mxu0 0.0
        %466 = vmatprep.subr.mxu0 0.0
        %467 = vmatpush2.msra.mxu0 0.0
        %468 = vmatprep.subr.mxu0 0.0
        %469 = vmatpush2.msra.mxu0 0.0
        %470 = vmatprep.mubr.f32.mxu0 0.0
        %471 = vmatmul.mubr.f32.gmra.mxu0 %v404
        %v472 = vpop.f32.mrf.mxu0
        %v473 = vadd.f32 0.0, %v472
        %v474 = vpop.f32.mrf.mxu0
        %475 = vdwg.mxu0
        %v476 = vadd.f32 %v395, %v473
        %v477 = vtanh.pop %v476
        %v478 = vmul.f32 %v477, 0.5
        %v479 = vadd.f32 %v478, 0.5
        %v480 = vmul.f32 %v479, 0.0
        %482 = vrot.lane.b32.xlu0 %v477, 64
        %v483 = vpop.permute.xlu0 %482
        %v485 = vmul.f32 %v479, %v483
        %487 = vrot.lane.b32.xlu0 %v485, 32
        %v488 = vpop.permute.xlu0 %487
        %v490 = vadd.f32 %v480, %v488
        %v491 = vtanh.pop %v490
        %493 = vrot.lane.b32.xlu0 %v491, 64
        %v494 = vpop.permute.xlu0 %493
        %v496 = vmul.f32 %v479, %v494
        %498 = vrot.lane.b32.xlu0 %v496, 32
        %v499 = vpop.permute.xlu0 %498
        %v500 = vsel %vm402, %v499, 0
        %502 = vmatprep.subr.mxu0 0.0
        %503 = vmatpush1.msra.mxu0 0.0
        %504 = vmatprep.subr.mxu0 0.0
        %505 = vmatpush1.msra.mxu0 0.0
        %506 = vmatprep.subr.mxu0 0.0
        %507 = vmatpush1.msra.mxu0 0.0
        %508 = vmatprep.subr.mxu0 0.0
        %509 = vmatpush1.msra.mxu0 0.0
        %510 = vmatprep.subr.mxu0 0.0
        %511 = vmatpush1.msra.mxu0 0.0
        %512 = vmatprep.subr.mxu0 0.0
        %513 = vmatpush1.msra.mxu0 0.0
        %514 = vmatprep.subr.mxu0 0.0
        %515 = vmatpush1.msra.mxu0 0.0
        %516 = vmatprep.subr.mxu0 0.0
        %517 = vmatpush1.msra.mxu0 0.0
        %518 = vmatprep.subr.mxu0 0.0
        %519 = vmatpush1.msra.mxu0 0.0
        %520 = vmatprep.subr.mxu0 0.0
        %521 = vmatpush1.msra.mxu0 0.0
        %522 = vmatprep.subr.mxu0 0.0
        %523 = vmatpush1.msra.mxu0 0.0
        %524 = vmatprep.subr.mxu0 0.0
        %525 = vmatpush1.msra.mxu0 0.0
        %526 = vmatprep.subr.mxu0 0.0
        %527 = vmatpush1.msra.mxu0 %v401
        %528 = vmatprep.subr.mxu0 0.0
        %529 = vmatpush1.msra.mxu0 %v400
        %530 = vmatprep.subr.mxu0 0.0
        %531 = vmatpush1.msra.mxu0 %v399
        %532 = vmatprep.subr.mxu0 0.0
        %533 = vmatpush1.msra.mxu0 %v398
        %534 = vmatprep.subr.mxu0 0.0
        %535 = vmatpush2.msra.mxu0 0.0
        %536 = vmatprep.subr.mxu0 0.0
        %537 = vmatpush2.msra.mxu0 0.0
        %538 = vmatprep.subr.mxu0 0.0
        %539 = vmatpush2.msra.mxu0 0.0
        %540 = vmatprep.subr.mxu0 0.0
        %541 = vmatpush2.msra.mxu0 0.0
        %542 = vmatprep.subr.mxu0 0.0
        %543 = vmatpush2.msra.mxu0 0.0
        %544 = vmatprep.subr.mxu0 0.0
        %545 = vmatpush2.msra.mxu0 0.0
        %546 = vmatprep.subr.mxu0 0.0
        %547 = vmatpush2.msra.mxu0 0.0
        %548 = vmatprep.subr.mxu0 0.0
        %549 = vmatpush2.msra.mxu0 0.0
        %550 = vmatprep.subr.mxu0 0.0
        %551 = vmatpush2.msra.mxu0 0.0
        %552 = vmatprep.subr.mxu0 0.0
        %553 = vmatpush2.msra.mxu0 0.0
        %554 = vmatprep.subr.mxu0 0.0
        %555 = vmatpush2.msra.mxu0 0.0
        %556 = vmatprep.subr.mxu0 0.0
        %557 = vmatpush2.msra.mxu0 0.0
        %558 = vmatprep.subr.mxu0 0.0
        %559 = vmatpush2.msra.mxu0 0.0
        %560 = vmatprep.subr.mxu0 0.0
        %561 = vmatpush2.msra.mxu0 0.0
        %562 = vmatprep.subr.mxu0 0.0
        %563 = vmatpush2.msra.mxu0 0.0
        %564 = vmatprep.subr.mxu0 0.0
        %565 = vmatpush2.msra.mxu0 0.0
        %566 = vmatprep.mubr.f32.mxu0 0.0
        %567 = vmatmul.mubr.f32.gmra.mxu0 %v500
        %v568 = vpop.f32.mrf.mxu0
        %v569 = vadd.f32 0.0, %v568
        %v570 = vpop.f32.mrf.mxu0
        %571 = vdwg.mxu0
        %v573 = vrot.slane %v569, 7
        %v575 = vadd.f32 %v395, %v573
        %v576 = vtanh.pop %v575
        %v577 = vmul.f32 %v576, 0.5
        %v578 = vadd.f32 %v577, 0.5
        %v580 = vrot.slane %v490, 7
        %v582 = vmul.f32 %v578, %v580
        %584 = vrot.lane.b32.xlu0 %v576, 64
        %v585 = vpop.permute.xlu0 %584
        %v587 = vmul.f32 %v578, %v585
        %589 = vrot.lane.b32.xlu0 %v587, 32
        %v590 = vpop.permute.xlu0 %589
        %v592 = vadd.f32 %v582, %v590
        %v593 = vtanh.pop %v592
        %595 = vrot.lane.b32.xlu0 %v593, 64
        %v596 = vpop.permute.xlu0 %595
        %v598 = vmul.f32 %v578, %v596
        %v600 = vrot.slane %v598, 1
        %601 = vrot.lane.b32.xlu0 %v600, 32
        %v602 = vpop.permute.xlu0 %601
        %v603 = vsel %vm402, %v602, 0
        %605 = vmatprep.subr.mxu0 0.0
        %606 = vmatpush1.msra.mxu0 0.0
        %607 = vmatprep.subr.mxu0 0.0
        %608 = vmatpush1.msra.mxu0 0.0
        %609 = vmatprep.subr.mxu0 0.0
        %610 = vmatpush1.msra.mxu0 0.0
        %611 = vmatprep.subr.mxu0 0.0
        %612 = vmatpush1.msra.mxu0 0.0
        %613 = vmatprep.subr.mxu0 0.0
        %614 = vmatpush1.msra.mxu0 0.0
        %615 = vmatprep.subr.mxu0 0.0
        %616 = vmatpush1.msra.mxu0 0.0
        %617 = vmatprep.subr.mxu0 0.0
        %618 = vmatpush1.msra.mxu0 0.0
        %619 = vmatprep.subr.mxu0 0.0
        %620 = vmatpush1.msra.mxu0 0.0
        %621 = vmatprep.subr.mxu0 0.0
        %622 = vmatpush1.msra.mxu0 0.0
        %623 = vmatprep.subr.mxu0 0.0
        %624 = vmatpush1.msra.mxu0 0.0
        %625 = vmatprep.subr.mxu0 0.0
        %626 = vmatpush1.msra.mxu0 0.0
        %627 = vmatprep.subr.mxu0 0.0
        %628 = vmatpush1.msra.mxu0 0.0
        %629 = vmatprep.subr.mxu0 0.0
        %630 = vmatpush1.msra.mxu0 %v401
        %631 = vmatprep.subr.mxu0 0.0
        %632 = vmatpush1.msra.mxu0 %v400
        %633 = vmatprep.subr.mxu0 0.0
        %634 = vmatpush1.msra.mxu0 %v399
        %635 = vmatprep.subr.mxu0 0.0
        %636 = vmatpush1.msra.mxu0 %v398
        %637 = vmatprep.subr.mxu0 0.0
        %638 = vmatpush2.msra.mxu0 0.0
        %639 = vmatprep.subr.mxu0 0.0
        %640 = vmatpush2.msra.mxu0 0.0
        %641 = vmatprep.subr.mxu0 0.0
        %642 = vmatpush2.msra.mxu0 0.0
        %643 = vmatprep.subr.mxu0 0.0
        %644 = vmatpush2.msra.mxu0 0.0
        %645 = vmatprep.subr.mxu0 0.0
        %646 = vmatpush2.msra.mxu0 0.0
        %647 = vmatprep.subr.mxu0 0.0
        %648 = vmatpush2.msra.mxu0 0.0
        %649 = vmatprep.subr.mxu0 0.0
        %650 = vmatpush2.msra.mxu0 0.0
        %651 = vmatprep.subr.mxu0 0.0
        %652 = vmatpush2.msra.mxu0 0.0
        %653 = vmatprep.subr.mxu0 0.0
        %654 = vmatpush2.msra.mxu0 0.0
        %655 = vmatprep.subr.mxu0 0.0
        %656 = vmatpush2.msra.mxu0 0.0
        %657 = vmatprep.subr.mxu0 0.0
        %658 = vmatpush2.msra.mxu0 0.0
        %659 = vmatprep.subr.mxu0 0.0
        %660 = vmatpush2.msra.mxu0 0.0
        %661 = vmatprep.subr.mxu0 0.0
        %662 = vmatpush2.msra.mxu0 0.0
        %663 = vmatprep.subr.mxu0 0.0
        %664 = vmatpush2.msra.mxu0 0.0
        %665 = vmatprep.subr.mxu0 0.0
        %666 = vmatpush2.msra.mxu0 0.0
        %667 = vmatprep.subr.mxu0 0.0
        %668 = vmatpush2.msra.mxu0 0.0
        %669 = vmatprep.mubr.f32.mxu0 0.0
        %670 = vmatmul.mubr.f32.gmra.mxu0 %v603
        %v671 = vpop.f32.mrf.mxu0
        %v672 = vadd.f32 0.0, %v671
        %v673 = vpop.f32.mrf.mxu0
        %674 = vdwg.mxu0
        %v676 = vrot.slane %v672, 6
        %v678 = vadd.f32 %v395, %v676
        %v679 = vtanh.pop %v678
        %v680 = vmul.f32 %v679, 0.5
        %v681 = vadd.f32 %v680, 0.5
        %v683 = vrot.slane %v592, 7
        %v685 = vmul.f32 %v681, %v683
        %687 = vrot.lane.b32.xlu0 %v679, 64
        %v688 = vpop.permute.xlu0 %687
        %v690 = vmul.f32 %v681, %v688
        %692 = vrot.lane.b32.xlu0 %v690, 32
        %v693 = vpop.permute.xlu0 %692
        %v695 = vadd.f32 %v685, %v693
        %v696 = vtanh.pop %v695
        %698 = vrot.lane.b32.xlu0 %v696, 64
        %v699 = vpop.permute.xlu0 %698
        %v701 = vmul.f32 %v681, %v699
        %v703 = vrot.slane %v701, 2
        %704 = vrot.lane.b32.xlu0 %v703, 32
        %v705 = vpop.permute.xlu0 %704
        %v706 = vsel %vm402, %v705, 0
        %708 = vmatprep.subr.mxu0 0.0
        %709 = vmatpush1.msra.mxu0 0.0
        %710 = vmatprep.subr.mxu0 0.0
        %711 = vmatpush1.msra.mxu0 0.0
        %712 = vmatprep.subr.mxu0 0.0
        %713 = vmatpush1.msra.mxu0 0.0
        %714 = vmatprep.subr.mxu0 0.0
        %715 = vmatpush1.msra.mxu0 0.0
        %716 = vmatprep.subr.mxu0 0.0
        %717 = vmatpush1.msra.mxu0 0.0
        %718 = vmatprep.subr.mxu0 0.0
        %719 = vmatpush1.msra.mxu0 0.0
        %720 = vmatprep.subr.mxu0 0.0
        %721 = vmatpush1.msra.mxu0 0.0
        %722 = vmatprep.subr.mxu0 0.0
        %723 = vmatpush1.msra.mxu0 0.0
        %724 = vmatprep.subr.mxu0 0.0
        %725 = vmatpush1.msra.mxu0 0.0
        %726 = vmatprep.subr.mxu0 0.0
        %727 = vmatpush1.msra.mxu0 0.0
        %728 = vmatprep.subr.mxu0 0.0
        %729 = vmatpush1.msra.mxu0 0.0
        %730 = vmatprep.subr.mxu0 0.0
        %731 = vmatpush1.msra.mxu0 0.0
        %732 = vmatprep.subr.mxu0 0.0
        %733 = vmatpush1.msra.mxu0 %v401
        %734 = vmatprep.subr.mxu0 0.0
        %735 = vmatpush1.msra.mxu0 %v400
        %736 = vmatprep.subr.mxu0 0.0
        %737 = vmatpush1.msra.mxu0 %v399
        %738 = vmatprep.subr.mxu0 0.0
        %739 = vmatpush1.msra.mxu0 %v398
        %740 = vmatprep.subr.mxu0 0.0
        %741 = vmatpush2.msra.mxu0 0.0
        %742 = vmatprep.subr.mxu0 0.0
        %743 = vmatpush2.msra.mxu0 0.0
        %744 = vmatprep.subr.mxu0 0.0
        %745 = vmatpush2.msra.mxu0 0.0
        %746 = vmatprep.subr.mxu0 0.0
        %747 = vmatpush2.msra.mxu0 0.0
        %748 = vmatprep.subr.mxu0 0.0
        %749 = vmatpush2.msra.mxu0 0.0
        %750 = vmatprep.subr.mxu0 0.0
        %751 = vmatpush2.msra.mxu0 0.0
        %752 = vmatprep.subr.mxu0 0.0
        %753 = vmatpush2.msra.mxu0 0.0
        %754 = vmatprep.subr.mxu0 0.0
        %755 = vmatpush2.msra.mxu0 0.0
        %756 = vmatprep.subr.mxu0 0.0
        %757 = vmatpush2.msra.mxu0 0.0
        %758 = vmatprep.subr.mxu0 0.0
        %759 = vmatpush2.msra.mxu0 0.0
        %760 = vmatprep.subr.mxu0 0.0
        %761 = vmatpush2.msra.mxu0 0.0
        %762 = vmatprep.subr.mxu0 0.0
        %763 = vmatpush2.msra.mxu0 0.0
        %764 = vmatprep.subr.mxu0 0.0
        %765 = vmatpush2.msra.mxu0 0.0
        %766 = vmatprep.subr.mxu0 0.0
        %767 = vmatpush2.msra.mxu0 0.0
        %768 = vmatprep.subr.mxu0 0.0
        %769 = vmatpush2.msra.mxu0 0.0
        %770 = vmatprep.subr.mxu0 0.0
        %771 = vmatpush2.msra.mxu0 0.0
        %772 = vmatprep.mubr.f32.mxu0 0.0
        %773 = vmatmul.mubr.f32.gmra.mxu0 %v706
        %v774 = vpop.f32.mrf.mxu0
        %v775 = vadd.f32 0.0, %v774
        %v776 = vpop.f32.mrf.mxu0
        %777 = vdwg.mxu0
        %v779 = vrot.slane %v775, 5
        %v781 = vadd.f32 %v395, %v779
        %v782 = vtanh.pop %v781
        %v783 = vmul.f32 %v782, 0.5
        %v784 = vadd.f32 %v783, 0.5
        %v786 = vrot.slane %v695, 7
        %v788 = vmul.f32 %v784, %v786
        %790 = vrot.lane.b32.xlu0 %v782, 64
        %v791 = vpop.permute.xlu0 %790
        %v793 = vmul.f32 %v784, %v791
        %795 = vrot.lane.b32.xlu0 %v793, 32
        %v796 = vpop.permute.xlu0 %795
        %v798 = vadd.f32 %v788, %v796
        %v799 = vtanh.pop %v798
        %801 = vrot.lane.b32.xlu0 %v799, 64
        %v802 = vpop.permute.xlu0 %801
        %v804 = vmul.f32 %v784, %v802
        %v806 = vrot.slane %v804, 3
        %807 = vrot.lane.b32.xlu0 %v806, 32
        %v808 = vpop.permute.xlu0 %807
        %v809 = vsel %vm402, %v808, 0
        %811 = vmatprep.subr.mxu0 0.0
        %812 = vmatpush1.msra.mxu0 0.0
        %813 = vmatprep.subr.mxu0 0.0
        %814 = vmatpush1.msra.mxu0 0.0
        %815 = vmatprep.subr.mxu0 0.0
        %816 = vmatpush1.msra.mxu0 0.0
        %817 = vmatprep.subr.mxu0 0.0
        %818 = vmatpush1.msra.mxu0 0.0
        %819 = vmatprep.subr.mxu0 0.0
        %820 = vmatpush1.msra.mxu0 0.0
        %821 = vmatprep.subr.mxu0 0.0
        %822 = vmatpush1.msra.mxu0 0.0
        %823 = vmatprep.subr.mxu0 0.0
        %824 = vmatpush1.msra.mxu0 0.0
        %825 = vmatprep.subr.mxu0 0.0
        %826 = vmatpush1.msra.mxu0 0.0
        %827 = vmatprep.subr.mxu0 0.0
        %828 = vmatpush1.msra.mxu0 0.0
        %829 = vmatprep.subr.mxu0 0.0
        %830 = vmatpush1.msra.mxu0 0.0
        %831 = vmatprep.subr.mxu0 0.0
        %832 = vmatpush1.msra.mxu0 0.0
        %833 = vmatprep.subr.mxu0 0.0
        %834 = vmatpush1.msra.mxu0 0.0
        %835 = vmatprep.subr.mxu0 0.0
        %836 = vmatpush1.msra.mxu0 %v401
        %837 = vmatprep.subr.mxu0 0.0
        %838 = vmatpush1.msra.mxu0 %v400
        %839 = vmatprep.subr.mxu0 0.0
        %840 = vmatpush1.msra.mxu0 %v399
        %841 = vmatprep.subr.mxu0 0.0
        %842 = vmatpush1.msra.mxu0 %v398
        %843 = vmatprep.subr.mxu0 0.0
        %844 = vmatpush2.msra.mxu0 0.0
        %845 = vmatprep.subr.mxu0 0.0
        %846 = vmatpush2.msra.mxu0 0.0
        %847 = vmatprep.subr.mxu0 0.0
        %848 = vmatpush2.msra.mxu0 0.0
        %849 = vmatprep.subr.mxu0 0.0
        %850 = vmatpush2.msra.mxu0 0.0
        %851 = vmatprep.subr.mxu0 0.0
        %852 = vmatpush2.msra.mxu0 0.0
        %853 = vmatprep.subr.mxu0 0.0
        %854 = vmatpush2.msra.mxu0 0.0
        %855 = vmatprep.subr.mxu0 0.0
        %856 = vmatpush2.msra.mxu0 0.0
        %857 = vmatprep.subr.mxu0 0.0
        %858 = vmatpush2.msra.mxu0 0.0
        %859 = vmatprep.subr.mxu0 0.0
        %860 = vmatpush2.msra.mxu0 0.0
        %861 = vmatprep.subr.mxu0 0.0
        %862 = vmatpush2.msra.mxu0 0.0
        %863 = vmatprep.subr.mxu0 0.0
        %864 = vmatpush2.msra.mxu0 0.0
        %865 = vmatprep.subr.mxu0 0.0
        %866 = vmatpush2.msra.mxu0 0.0
        %867 = vmatprep.subr.mxu0 0.0
        %868 = vmatpush2.msra.mxu0 0.0
        %869 = vmatprep.subr.mxu0 0.0
        %870 = vmatpush2.msra.mxu0 0.0
        %871 = vmatprep.subr.mxu0 0.0
        %872 = vmatpush2.msra.mxu0 0.0
        %873 = vmatprep.subr.mxu0 0.0
        %874 = vmatpush2.msra.mxu0 0.0
        %875 = vmatprep.mubr.f32.mxu0 0.0
        %876 = vmatmul.mubr.f32.gmra.mxu0 %v809
        %v877 = vpop.f32.mrf.mxu0
        %v878 = vadd.f32 0.0, %v877
        %v879 = vpop.f32.mrf.mxu0
        %880 = vdwg.mxu0
        %v882 = vrot.slane %v878, 4
        %v884 = vadd.f32 %v395, %v882
        %v885 = vtanh.pop %v884
        %v886 = vmul.f32 %v885, 0.5
        %v887 = vadd.f32 %v886, 0.5
        %v889 = vrot.slane %v798, 7
        %v891 = vmul.f32 %v887, %v889
        %893 = vrot.lane.b32.xlu0 %v885, 64
        %v894 = vpop.permute.xlu0 %893
        %v896 = vmul.f32 %v887, %v894
        %898 = vrot.lane.b32.xlu0 %v896, 32
        %v899 = vpop.permute.xlu0 %898
        %v901 = vadd.f32 %v891, %v899
        %v902 = vtanh.pop %v901
        %904 = vrot.lane.b32.xlu0 %v902, 64
        %v905 = vpop.permute.xlu0 %904
        %v907 = vmul.f32 %v887, %v905
        %v909 = vrot.slane %v907, 4
        %910 = vrot.lane.b32.xlu0 %v909, 32
        %v911 = vpop.permute.xlu0 %910
        %v912 = vsel %vm402, %v911, 0
        %914 = vmatprep.subr.mxu0 0.0
        %915 = vmatpush1.msra.mxu0 0.0
        %916 = vmatprep.subr.mxu0 0.0
        %917 = vmatpush1.msra.mxu0 0.0
        %918 = vmatprep.subr.mxu0 0.0
        %919 = vmatpush1.msra.mxu0 0.0
        %920 = vmatprep.subr.mxu0 0.0
        %921 = vmatpush1.msra.mxu0 0.0
        %922 = vmatprep.subr.mxu0 0.0
        %923 = vmatpush1.msra.mxu0 0.0
        %924 = vmatprep.subr.mxu0 0.0
        %925 = vmatpush1.msra.mxu0 0.0
        %926 = vmatprep.subr.mxu0 0.0
        %927 = vmatpush1.msra.mxu0 0.0
        %928 = vmatprep.subr.mxu0 0.0
        %929 = vmatpush1.msra.mxu0 0.0
        %930 = vmatprep.subr.mxu0 0.0
        %931 = vmatpush1.msra.mxu0 0.0
        %932 = vmatprep.subr.mxu0 0.0
        %933 = vmatpush1.msra.mxu0 0.0
        %934 = vmatprep.subr.mxu0 0.0
        %935 = vmatpush1.msra.mxu0 0.0
        %936 = vmatprep.subr.mxu0 0.0
        %937 = vmatpush1.msra.mxu0 0.0
        %938 = vmatprep.subr.mxu0 0.0
        %939 = vmatpush1.msra.mxu0 %v401
        %940 = vmatprep.subr.mxu0 0.0
        %941 = vmatpush1.msra.mxu0 %v400
        %942 = vmatprep.subr.mxu0 0.0
        %943 = vmatpush1.msra.mxu0 %v399
        %944 = vmatprep.subr.mxu0 0.0
        %945 = vmatpush1.msra.mxu0 %v398
        %946 = vmatprep.subr.mxu0 0.0
        %947 = vmatpush2.msra.mxu0 0.0
        %948 = vmatprep.subr.mxu0 0.0
        %949 = vmatpush2.msra.mxu0 0.0
        %950 = vmatprep.subr.mxu0 0.0
        %951 = vmatpush2.msra.mxu0 0.0
        %952 = vmatprep.subr.mxu0 0.0
        %953 = vmatpush2.msra.mxu0 0.0
        %954 = vmatprep.subr.mxu0 0.0
        %955 = vmatpush2.msra.mxu0 0.0
        %956 = vmatprep.subr.mxu0 0.0
        %957 = vmatpush2.msra.mxu0 0.0
        %958 = vmatprep.subr.mxu0 0.0
        %959 = vmatpush2.msra.mxu0 0.0
        %960 = vmatprep.subr.mxu0 0.0
        %961 = vmatpush2.msra.mxu0 0.0
        %962 = vmatprep.subr.mxu0 0.0
        %963 = vmatpush2.msra.mxu0 0.0
        %964 = vmatprep.subr.mxu0 0.0
        %965 = vmatpush2.msra.mxu0 0.0
        %966 = vmatprep.subr.mxu0 0.0
        %967 = vmatpush2.msra.mxu0 0.0
        %968 = vmatprep.subr.mxu0 0.0
        %969 = vmatpush2.msra.mxu0 0.0
        %970 = vmatprep.subr.mxu0 0.0
        %971 = vmatpush2.msra.mxu0 0.0
        %972 = vmatprep.subr.mxu0 0.0
        %973 = vmatpush2.msra.mxu0 0.0
        %974 = vmatprep.subr.mxu0 0.0
        %975 = vmatpush2.msra.mxu0 0.0
        %976 = vmatprep.subr.mxu0 0.0
        %977 = vmatpush2.msra.mxu0 0.0
        %978 = vmatprep.mubr.f32.mxu0 0.0
        %979 = vmatmul.mubr.f32.gmra.mxu0 %v912
        %v980 = vpop.f32.mrf.mxu0
        %v981 = vadd.f32 0.0, %v980
        %v982 = vpop.f32.mrf.mxu0
        %983 = vdwg.mxu0
        %v985 = vrot.slane %v981, 3
        %v987 = vadd.f32 %v395, %v985
        %v988 = vtanh.pop %v987
        %v989 = vmul.f32 %v988, 0.5
        %v990 = vadd.f32 %v989, 0.5
        %v992 = vrot.slane %v901, 7
        %v994 = vmul.f32 %v990, %v992
        %996 = vrot.lane.b32.xlu0 %v988, 64
        %v997 = vpop.permute.xlu0 %996
        %v999 = vmul.f32 %v990, %v997
        %1001 = vrot.lane.b32.xlu0 %v999, 32
        %v1002 = vpop.permute.xlu0 %1001
        %v1004 = vadd.f32 %v994, %v1002
        %v1005 = vtanh.pop %v1004
        %1007 = vrot.lane.b32.xlu0 %v1005, 64
        %v1008 = vpop.permute.xlu0 %1007
        %v1010 = vmul.f32 %v990, %v1008
        %v1012 = vrot.slane %v1010, 5
        %1013 = vrot.lane.b32.xlu0 %v1012, 32
        %v1014 = vpop.permute.xlu0 %1013
        %v1015 = vsel %vm402, %v1014, 0
        %1017 = vmatprep.subr.mxu0 0.0
        %1018 = vmatpush1.msra.mxu0 0.0
        %1019 = vmatprep.subr.mxu0 0.0
        %1020 = vmatpush1.msra.mxu0 0.0
        %1021 = vmatprep.subr.mxu0 0.0
        %1022 = vmatpush1.msra.mxu0 0.0
        %1023 = vmatprep.subr.mxu0 0.0
        %1024 = vmatpush1.msra.mxu0 0.0
        %1025 = vmatprep.subr.mxu0 0.0
        %1026 = vmatpush1.msra.mxu0 0.0
        %1027 = vmatprep.subr.mxu0 0.0
        %1028 = vmatpush1.msra.mxu0 0.0
        %1029 = vmatprep.subr.mxu0 0.0
        %1030 = vmatpush1.msra.mxu0 0.0
        %1031 = vmatprep.subr.mxu0 0.0
        %1032 = vmatpush1.msra.mxu0 0.0
        %1033 = vmatprep.subr.mxu0 0.0
        %1034 = vmatpush1.msra.mxu0 0.0
        %1035 = vmatprep.subr.mxu0 0.0
        %1036 = vmatpush1.msra.mxu0 0.0
        %1037 = vmatprep.subr.mxu0 0.0
        %1038 = vmatpush1.msra.mxu0 0.0
        %1039 = vmatprep.subr.mxu0 0.0
        %1040 = vmatpush1.msra.mxu0 0.0
        %1041 = vmatprep.subr.mxu0 0.0
        %1042 = vmatpush1.msra.mxu0 %v401
        %1043 = vmatprep.subr.mxu0 0.0
        %1044 = vmatpush1.msra.mxu0 %v400
        %1045 = vmatprep.subr.mxu0 0.0
        %1046 = vmatpush1.msra.mxu0 %v399
        %1047 = vmatprep.subr.mxu0 0.0
        %1048 = vmatpush1.msra.mxu0 %v398
        %1049 = vmatprep.subr.mxu0 0.0
        %1050 = vmatpush2.msra.mxu0 0.0
        %1051 = vmatprep.subr.mxu0 0.0
        %1052 = vmatpush2.msra.mxu0 0.0
        %1053 = vmatprep.subr.mxu0 0.0
        %1054 = vmatpush2.msra.mxu0 0.0
        %1055 = vmatprep.subr.mxu0 0.0
        %1056 = vmatpush2.msra.mxu0 0.0
        %1057 = vmatprep.subr.mxu0 0.0
        %1058 = vmatpush2.msra.mxu0 0.0
        %1059 = vmatprep.subr.mxu0 0.0
        %1060 = vmatpush2.msra.mxu0 0.0
        %1061 = vmatprep.subr.mxu0 0.0
        %1062 = vmatpush2.msra.mxu0 0.0
        %1063 = vmatprep.subr.mxu0 0.0
        %1064 = vmatpush2.msra.mxu0 0.0
        %1065 = vmatprep.subr.mxu0 0.0
        %1066 = vmatpush2.msra.mxu0 0.0
        %1067 = vmatprep.subr.mxu0 0.0
        %1068 = vmatpush2.msra.mxu0 0.0
        %1069 = vmatprep.subr.mxu0 0.0
        %1070 = vmatpush2.msra.mxu0 0.0
        %1071 = vmatprep.subr.mxu0 0.0
        %1072 = vmatpush2.msra.mxu0 0.0
        %1073 = vmatprep.subr.mxu0 0.0
        %1074 = vmatpush2.msra.mxu0 0.0
        %1075 = vmatprep.subr.mxu0 0.0
        %1076 = vmatpush2.msra.mxu0 0.0
        %1077 = vmatprep.subr.mxu0 0.0
        %1078 = vmatpush2.msra.mxu0 0.0
        %1079 = vmatprep.subr.mxu0 0.0
        %1080 = vmatpush2.msra.mxu0 0.0
        %1081 = vmatprep.mubr.f32.mxu0 0.0
        %1082 = vmatmul.mubr.f32.gmra.mxu0 %v1015
        %v1083 = vpop.f32.mrf.mxu0
        %v1084 = vadd.f32 0.0, %v1083
        %v1085 = vpop.f32.mrf.mxu0
        %1086 = vdwg.mxu0
        %v1088 = vrot.slane %v1084, 2
        %v1090 = vadd.f32 %v395, %v1088
        %v1091 = vtanh.pop %v1090
        %v1092 = vmul.f32 %v1091, 0.5
        %v1093 = vadd.f32 %v1092, 0.5
        %v1095 = vrot.slane %v1004, 7
        %v1097 = vmul.f32 %v1093, %v1095
        %1099 = vrot.lane.b32.xlu0 %v1091, 64
        %v1100 = vpop.permute.xlu0 %1099
        %v1102 = vmul.f32 %v1093, %v1100
        %1104 = vrot.lane.b32.xlu0 %v1102, 32
        %v1105 = vpop.permute.xlu0 %1104
        %v1107 = vadd.f32 %v1097, %v1105
        %v1108 = vtanh.pop %v1107
        %1110 = vrot.lane.b32.xlu0 %v1108, 64
        %v1111 = vpop.permute.xlu0 %1110
        %v1113 = vmul.f32 %v1093, %v1111
        %v1115 = vrot.slane %v1113, 6
        %1116 = vrot.lane.b32.xlu0 %v1115, 32
        %v1117 = vpop.permute.xlu0 %1116
        %v1118 = vsel %vm402, %v1117, 0
        %1120 = vmatprep.subr.mxu0 0.0
        %1121 = vmatpush1.msra.mxu0 0.0
        %1122 = vmatprep.subr.mxu0 0.0
        %1123 = vmatpush1.msra.mxu0 0.0
        %1124 = vmatprep.subr.mxu0 0.0
        %1125 = vmatpush1.msra.mxu0 0.0
        %1126 = vmatprep.subr.mxu0 0.0
        %1127 = vmatpush1.msra.mxu0 0.0
        %1128 = vmatprep.subr.mxu0 0.0
        %1129 = vmatpush1.msra.mxu0 0.0
        %1130 = vmatprep.subr.mxu0 0.0
        %1131 = vmatpush1.msra.mxu0 0.0
        %1132 = vmatprep.subr.mxu0 0.0
        %1133 = vmatpush1.msra.mxu0 0.0
        %1134 = vmatprep.subr.mxu0 0.0
        %1135 = vmatpush1.msra.mxu0 0.0
        %1136 = vmatprep.subr.mxu0 0.0
        %1137 = vmatpush1.msra.mxu0 0.0
        %1138 = vmatprep.subr.mxu0 0.0
        %1139 = vmatpush1.msra.mxu0 0.0
        %1140 = vmatprep.subr.mxu0 0.0
        %1141 = vmatpush1.msra.mxu0 0.0
        %1142 = vmatprep.subr.mxu0 0.0
        %1143 = vmatpush1.msra.mxu0 0.0
        %1144 = vmatprep.subr.mxu0 0.0
        %1145 = vmatpush1.msra.mxu0 %v401
        %1146 = vmatprep.subr.mxu0 0.0
        %1147 = vmatpush1.msra.mxu0 %v400
        %1148 = vmatprep.subr.mxu0 0.0
        %1149 = vmatpush1.msra.mxu0 %v399
        %1150 = vmatprep.subr.mxu0 0.0
        %1151 = vmatpush1.msra.mxu0 %v398
        %1152 = vmatprep.subr.mxu0 0.0
        %1153 = vmatpush2.msra.mxu0 0.0
        %1154 = vmatprep.subr.mxu0 0.0
        %1155 = vmatpush2.msra.mxu0 0.0
        %1156 = vmatprep.subr.mxu0 0.0
        %1157 = vmatpush2.msra.mxu0 0.0
        %1158 = vmatprep.subr.mxu0 0.0
        %1159 = vmatpush2.msra.mxu0 0.0
        %1160 = vmatprep.subr.mxu0 0.0
        %1161 = vmatpush2.msra.mxu0 0.0
        %1162 = vmatprep.subr.mxu0 0.0
        %1163 = vmatpush2.msra.mxu0 0.0
        %1164 = vmatprep.subr.mxu0 0.0
        %1165 = vmatpush2.msra.mxu0 0.0
        %1166 = vmatprep.subr.mxu0 0.0
        %1167 = vmatpush2.msra.mxu0 0.0
        %1168 = vmatprep.subr.mxu0 0.0
        %1169 = vmatpush2.msra.mxu0 0.0
        %1170 = vmatprep.subr.mxu0 0.0
        %1171 = vmatpush2.msra.mxu0 0.0
        %1172 = vmatprep.subr.mxu0 0.0
        %1173 = vmatpush2.msra.mxu0 0.0
        %1174 = vmatprep.subr.mxu0 0.0
        %1175 = vmatpush2.msra.mxu0 0.0
        %1176 = vmatprep.subr.mxu0 0.0
        %1177 = vmatpush2.msra.mxu0 0.0
        %1178 = vmatprep.subr.mxu0 0.0
        %1179 = vmatpush2.msra.mxu0 0.0
        %1180 = vmatprep.subr.mxu0 0.0
        %1181 = vmatpush2.msra.mxu0 0.0
        %1182 = vmatprep.subr.mxu0 0.0
        %1183 = vmatpush2.msra.mxu0 0.0
        %1184 = vmatprep.mubr.f32.mxu0 0.0
        %1185 = vmatmul.mubr.f32.gmra.mxu0 %v1118
        %v1186 = vpop.f32.mrf.mxu0
        %v1187 = vadd.f32 0.0, %v1186
        %v1188 = vpop.f32.mrf.mxu0
        %1189 = vdwg.mxu0
        %v1191 = vrot.slane %v1187, 1
        %v1193 = vadd.f32 %v395, %v1191
        %v1194 = vtanh.pop %v1193
        %v1195 = vmul.f32 %v1194, 0.5
        %v1196 = vadd.f32 %v1195, 0.5
        %v1198 = vrot.slane %v1107, 7
        %v1200 = vmul.f32 %v1196, %v1198
        %1202 = vrot.lane.b32.xlu0 %v1194, 64
        %v1203 = vpop.permute.xlu0 %1202
        %v1205 = vmul.f32 %v1196, %v1203
        %1207 = vrot.lane.b32.xlu0 %v1205, 32
        %v1208 = vpop.permute.xlu0 %1207
        %v1210 = vadd.f32 %v1200, %v1208
        %v1211 = vtanh.pop %v1210
        %1213 = vrot.lane.b32.xlu0 %v1211, 64
        %v1214 = vpop.permute.xlu0 %1213
        %v1216 = vmul.f32 %v1196, %v1214
        %vm1217 = vcmask 1040384
        %v1218 = vsel %vm1217, %v496, %v598
        %v1219 = vsel %vm324, %v1218, %v701
        %vm1220 = vcmask 1042432
        %v1221 = vsel %vm1220, %v1219, %v804
        %vm1222 = vcmask 1043456
        %v1223 = vsel %vm1222, %v1221, %v907
        %vm1224 = vcmask 1044480
        %v1225 = vsel %vm1224, %v1223, %v1010
        %vm1226 = vcmask 1045504
        %v1227 = vsel %vm1226, %v1225, %v1113
        %vm1228 = vcmask 1046528
        %v1229 = vsel %vm1228, %v1227, %v1216
        %v1230 = vld [vmem:[%s4] sm:$0x1]
        %s1231 = sld [smem:[#allocation2]]
        %v1232 = vstv %s1231
        %1234 = vrot.lane.b32.xlu0 %v1229, 32
        %v1235 = vpop.permute.xlu0 %1234
        %v1237 = vsel %vm402, %v1230, 0
        %v1239 = vsel %vm402, %v1235, 0
        %1241 = vmatprep.subr.mxu0 0.0
        %1242 = vmatpush1.xpose.msra.mxu0 0.0
        %1243 = vmatprep.subr.mxu0 0.0
        %1244 = vmatpush1.xpose.msra.mxu0 0.0
        %1245 = vmatprep.subr.mxu0 0.0
        %1246 = vmatpush1.xpose.msra.mxu0 0.0
        %1247 = vmatprep.subr.mxu0 0.0
        %1248 = vmatpush1.xpose.msra.mxu0 0.0
        %1249 = vmatprep.subr.mxu0 0.0
        %1250 = vmatpush1.xpose.msra.mxu0 0.0
        %1251 = vmatprep.subr.mxu0 0.0
        %1252 = vmatpush1.xpose.msra.mxu0 0.0
        %1253 = vmatprep.subr.mxu0 0.0
        %1254 = vmatpush1.xpose.msra.mxu0 0.0
        %1255 = vmatprep.subr.mxu0 0.0
        %1256 = vmatpush1.xpose.msra.mxu0 0.0
        %1257 = vmatprep.subr.mxu0 0.0
        %1258 = vmatpush1.xpose.msra.mxu0 0.0
        %1259 = vmatprep.subr.mxu0 0.0
        %1260 = vmatpush1.xpose.msra.mxu0 0.0
        %1261 = vmatprep.subr.mxu0 0.0
        %1262 = vmatpush1.xpose.msra.mxu0 0.0
        %1263 = vmatprep.subr.mxu0 0.0
        %1264 = vmatpush1.xpose.msra.mxu0 0.0
        %1265 = vmatprep.subr.mxu0 0.0
        %1266 = vmatpush1.xpose.msra.mxu0 0.0
        %1267 = vmatprep.subr.mxu0 0.0
        %1268 = vmatpush1.xpose.msra.mxu0 0.0
        %1269 = vmatprep.subr.mxu0 0.0
        %1270 = vmatpush1.xpose.msra.mxu0 0.0
        %1271 = vmatprep.subr.mxu0 0.0
        %1272 = vmatpush1.xpose.msra.mxu0 %v1239
        %1273 = vmatprep.subr.mxu0 0.0
        %1274 = vmatpush2.xpose.msra.mxu0 0.0
        %1275 = vmatprep.subr.mxu0 0.0
        %1276 = vmatpush2.xpose.msra.mxu0 0.0
        %1277 = vmatprep.subr.mxu0 0.0
        %1278 = vmatpush2.xpose.msra.mxu0 0.0
        %1279 = vmatprep.subr.mxu0 0.0
        %1280 = vmatpush2.xpose.msra.mxu0 0.0
        %1281 = vmatprep.subr.mxu0 0.0
        %1282 = vmatpush2.xpose.msra.mxu0 0.0
        %1283 = vmatprep.subr.mxu0 0.0
        %1284 = vmatpush2.xpose.msra.mxu0 0.0
        %1285 = vmatprep.subr.mxu0 0.0
        %1286 = vmatpush2.xpose.msra.mxu0 0.0
        %1287 = vmatprep.subr.mxu0 0.0
        %1288 = vmatpush2.xpose.msra.mxu0 0.0
        %1289 = vmatprep.subr.mxu0 0.0
        %1290 = vmatpush2.xpose.msra.mxu0 0.0
        %1291 = vmatprep.subr.mxu0 0.0
        %1292 = vmatpush2.xpose.msra.mxu0 0.0
        %1293 = vmatprep.subr.mxu0 0.0
        %1294 = vmatpush2.xpose.msra.mxu0 0.0
        %1295 = vmatprep.subr.mxu0 0.0
        %1296 = vmatpush2.xpose.msra.mxu0 0.0
        %1297 = vmatprep.subr.mxu0 0.0
        %1298 = vmatpush2.xpose.msra.mxu0 0.0
        %1299 = vmatprep.subr.mxu0 0.0
        %1300 = vmatpush2.xpose.msra.mxu0 0.0
        %1301 = vmatprep.subr.mxu0 0.0
        %1302 = vmatpush2.xpose.msra.mxu0 0.0
        %1303 = vmatprep.subr.mxu0 0.0
        %1304 = vmatpush2.xpose.msra.mxu0 0.0
        %1305 = vmatprep.mubr.f32.mxu0 0.0
        %1306 = vmatmul.mubr.f32.gmra.mxu0 %v1237
        %v1307 = vpop.f32.mrf.mxu0
        %v1308 = vadd.f32 %v1232, %v1307
        %v1309 = vpop.f32.mrf.mxu0
        %1310 = vdwg.mxu0
        %v1311 = vtanh.pop %v1308
        %vm1312 = vcmask 57344
        %1313 = vst.msk [vmem:[%s306] sm:$0x1] %vm1312, %v1311
        %s1314 = sand.u32 %s169, 1
        %s1315 = scalar_lea.sflag [#allocation5], %s1314
        %s1316 = sand.u32 %s169, 1
        %s1317 = scalar_lea.vmem [#allocation9], %s1316
        // Predicated region
        $region57: #{tpu_custom_call.1} parent=43 // pred_check
          %p1318 = pneg %p179
        $region58: #{tpu_custom_call.1} parent=43 // pred_check_branch
          %1320 = sbr.rel (%p1318) target = $region60
        $region59: #{tpu_custom_call.1} parent=43 // pred_region
          %s1322 = ssub.s32 16, 16
          %1323 = vsyncadd %s1315, %s1322
          %s1324 = smul.addr %s25, 16
          %s1325 = scalar_lea.hbm %s6, %s1324
          %s1327 = sshll.u32 %s1317, 4
          %s1328 = int_to_ptr.vmem [resolvable:$true] %s1327
          %1330 = dma.vmem_to_hbm [thread:$0]  %s1328, 16, %s1325, %s1315
        $region60: #{tpu_custom_call.1} parent=43 // pred_fallthru
          _
      $region44: #{tpu_custom_call.1} parent=5 // pred_fallthru
        _
      %p1331 = scmp.le.s32.totalorder 2, %s20
      // Predicated region
      $region61: #{tpu_custom_call.1} parent=5 // pred_check
        %p1332 = pneg %p1331
      $region62: #{tpu_custom_call.1} parent=5 // pred_check_branch
        %1334 = sbr.rel (%p1332) target = $region64
      $region63: #{tpu_custom_call.1} parent=5 // pred_region
        %s1335 = ssub.s32 %s20, 2
        // Predicated region
        $region65: #{tpu_custom_call.1} parent=63 // pred_check
          %p1336 = pneg %p185
        $region66: #{tpu_custom_call.1} parent=63 // pred_check_branch
          %1338 = sbr.rel (%p1336) target = $region68
        $region67: #{tpu_custom_call.1} parent=63 // pred_region
          %s1339 = sand.u32 %s170, 1
          %s1340 = scalar_lea.sflag [#allocation5], %s1339
          %s1341 = sand.u32 %s170, 1
          %s1342 = scalar_lea.vmem [#allocation9], %s1341
          %1343 = dma.done %s1340, 16
        $region68: #{tpu_custom_call.1} parent=63 // pred_fallthru
          _
      $region64: #{tpu_custom_call.1} parent=5 // pred_fallthru
        _
    $region6: #{tpu_custom_call.1} parent=1 // loop_footer
      %s24 = sadd.s32 1, %s20
    $region7: #{tpu_custom_call.1} parent=1 // loop_footer_branch
      %19 = sbr.rel target = $region3
    $region8: #{tpu_custom_call.1} parent=1 // loop_exit
      _
    %1344 = vsyncpa [#allocation4], 1
    %s1345 = scalar_lea.sflag [#allocation4], 1
    %1346 = vsyncpa %s1345, 1
    %1347 = vsyncpa [#allocation7], 1
    %1348 = vsyncpa [#allocation5], 1
    %s1349 = scalar_lea.sflag [#allocation5], 1
    %1350 = vsyncpa %s1349, 1

</llo_original>
